<compile_context>
chip_gen: v7x
topology: tpu7x:2x2x1
jax: 0.10.0
libtpu: 0.0.40
codegen_flags: <defaults>
</compile_context>

<pallas_src>
import functools

import jax
import jax.numpy as jnp
from jax.experimental import pallas as pl
from jax.experimental.pallas import tpu as pltpu

_SUBLANE = 8        # f32 sublane tile
_LANE = 128         # lane width
_NEG_BIG = -1e30    # bias for padded vocab columns (excluded from softmax mass)


def _round_up(x, m):
    return ((x + m - 1) // m) * m


def _vmem_spec():
    return pl.BlockSpec(memory_space=pltpu.MemorySpace.VMEM)


# ---------------------------------------------------------------------------
# Pallas kernels
# ---------------------------------------------------------------------------
def _gru_seq_kernel(x_ref, h0_ref, wih_ref, whh_ref, bih_ref, bhh_ref,
                    out_ref, hT_ref, gi_ref):
    """Single-layer GRU over the whole sequence in one kernel invocation.

    x_ref   : (T*Bp, E)   time-major flattened inputs (row = t*Bp + b)
    h0_ref  : (Bp, Hp)    initial hidden
    wih_ref : (E, 3*Hp)   input->hidden weights, gate order [r, z, n], each gate Hp wide
    whh_ref : (Hp, 3*Hp)  hidden->hidden weights
    bih_ref : (1, 3*Hp)
    bhh_ref : (1, 3*Hp)
    out_ref : (T*Bp, Hp)  per-step hidden states
    hT_ref  : (Bp, Hp)    final hidden
    gi_ref  : VMEM (T*Bp, 3*Hp) scratch for the hoisted input projection
    """
    Bp, Hp = h0_ref.shape
    T = x_ref.shape[0] // Bp

    # Hoisted input projection: one big MXU matmul for the whole sequence
    # (M = T*Bp instead of Bp), off the sequential critical path.
    gi_ref[...] = (
        jnp.dot(x_ref[...], wih_ref[...], preferred_element_type=jnp.float32)
        + bih_ref[...])

    whh = whh_ref[...]
    bhh = bhh_ref[...]

    def step(t, h):
        row = pl.multiple_of(t * Bp, Bp)
        gi = gi_ref[pl.ds(row, Bp), :]                               # (Bp, 3*Hp)
        gh = jnp.dot(h, whh, preferred_element_type=jnp.float32) + bhh
        # Gate slices start at lane offsets 0 / Hp / 2*Hp (multiples of 128).
        i_r, i_z, i_n = gi[:, :Hp], gi[:, Hp:2 * Hp], gi[:, 2 * Hp:]
        h_r, h_z, h_n = gh[:, :Hp], gh[:, Hp:2 * Hp], gh[:, 2 * Hp:]
        r = jax.nn.sigmoid(i_r + h_r)
        z = jax.nn.sigmoid(i_z + h_z)
        n = jnp.tanh(i_n + r * h_n)
        h_new = (1.0 - z) * n + z * h
        out_ref[pl.ds(row, Bp), :] = h_new
        return h_new

    hT = jax.lax.fori_loop(0, T, step, h0_ref[...], unroll=True)
    hT_ref[...] = hT


def _proj_logsoftmax_kernel(x_ref, w_ref, b_ref, out_ref):
    """logits = x @ W + b, then log_softmax over the (lane-padded) vocab axis.

    x_ref : (R_tile, Hp), w_ref : (Hp, Vp), b_ref : (1, Vp), out_ref : (R_tile, Vp)
    Padded vocab columns carry a -1e30 bias -> exactly zero softmax mass.
    """
    logits = (jnp.dot(x_ref[...], w_ref[...], preferred_element_type=jnp.float32)
              + b_ref[...])
    m = jnp.max(logits, axis=-1, keepdims=True)
    lse = jnp.log(jnp.sum(jnp.exp(logits - m), axis=-1, keepdims=True)) + m
    out_ref[...] = logits - lse


# ---------------------------------------------------------------------------
# Wrappers around pallas_call
# ---------------------------------------------------------------------------
def gru_layer(x_flat, h0, w_ih, w_hh, b_ih, b_hh):
    """x_flat: (T*Bp, E) time-major flattened. Returns ((T*Bp, Hp), (Bp, Hp))."""
    TB = x_flat.shape[0]
    Bp, Hp = h0.shape
    out, h_t = pl.pallas_call(
        _gru_seq_kernel,
        out_shape=(jax.ShapeDtypeStruct((TB, Hp), jnp.float32),
                   jax.ShapeDtypeStruct((Bp, Hp), jnp.float32)),
        in_specs=[_vmem_spec() for _ in range(6)],
        out_specs=(_vmem_spec(), _vmem_spec()),
        scratch_shapes=[pltpu.VMEM((TB, 3 * Hp), jnp.float32)],
    )(x_flat, h0, w_ih, w_hh, b_ih, b_hh)
    return out, h_t


def project_logsoftmax(x_flat, w, b, *, row_tile=256):
    """x_flat: (R, Hp). Returns (R, Vp) log-softmax scores (Vp lane-padded)."""
    R, Hp = x_flat.shape
    Vp = w.shape[-1]
    if R <= row_tile:
        tile, R_pad = R, R
    else:
        tile = row_tile
        R_pad = _round_up(R, row_tile)
        if R_pad != R:
            x_flat = jnp.pad(x_flat, ((0, R_pad - R), (0, 0)))
    out = pl.pallas_call(
        _proj_logsoftmax_kernel,
        out_shape=jax.ShapeDtypeStruct((R_pad, Vp), jnp.float32),
        grid=(R_pad // tile,),
        in_specs=[
            pl.BlockSpec((tile, Hp), lambda i: (i, 0)),
            # Weight / bias blocks are grid-invariant (constant index_map); the
            # pipeline keeps them resident instead of re-fetching per row tile.
            # TODO(synk): for realistic H/V also tile Vp and raise vmem_limit_bytes.
            pl.BlockSpec((Hp, Vp), lambda i: (0, 0)),
            pl.BlockSpec((1, Vp), lambda i: (0, 0)),
        ],
        out_specs=pl.BlockSpec((tile, Vp), lambda i: (i, 0)),
        # Row tiles are independent -> "parallel" lets v7x shard them across its
        # two TensorCores; harmless on v5e/v6e.
        compiler_params=pltpu.CompilerParams(dimension_semantics=("parallel",)),
    )(x_flat, w, b)
    return out[:R] if R_pad != R else out


# ---------------------------------------------------------------------------
# Parameter construction (+ lane/sublane-dense padding for the kernels)
# ---------------------------------------------------------------------------
def _uniform(key, shape, bound):
    return jax.random.uniform(key, shape, jnp.float32, minval=-bound, maxval=bound)


def init_seq2seq_params(key, input_vocab, target_vocab, emb_size, num_layer, hidden_size):
    """Unpadded parameters (gate order [r, z, n], weights stored transposed)."""
    bound = 1.0 / (hidden_size ** 0.5)
    keys = iter(jax.random.split(key, 4 + 8 * num_layer * 2 + 2))
    params = {
        "enc_emb": _uniform(next(keys), (input_vocab, emb_size), 1.0),
        "dec_emb": _uniform(next(keys), (target_vocab, emb_size), 1.0),
        "enc_gru": [],
        "dec_gru": [],
        "out_w": _uniform(next(keys), (hidden_size, target_vocab), bound),
        "out_b": _uniform(next(keys), (1, target_vocab), bound),
    }
    for which in ("enc_gru", "dec_gru"):
        for layer in range(num_layer):
            in_dim = emb_size if layer == 0 else hidden_size
            params[which].append({
                "w_ih": _uniform(next(keys), (in_dim, 3 * hidden_size), bound),
                "w_hh": _uniform(next(keys), (hidden_size, 3 * hidden_size), bound),
                "b_ih": _uniform(next(keys), (1, 3 * hidden_size), bound),
                "b_hh": _uniform(next(keys), (1, 3 * hidden_size), bound),
            })
    return params


def prepare_kernel_params(params, hidden_size):
    """Pad parameters to lane/sublane-dense kernel layout.

    - Each GRU gate padded H -> Hp (multiple of 128) with zero weights/biases, so
      padded hidden columns stay exactly 0 through the recurrence.
    - Projection padded (H, V) -> (Hp, Vp); padded vocab columns get -1e30 bias.
    """
    H = hidden_size
    Hp = _round_up(H, _LANE)
    V = params["out_w"].shape[-1]
    Vp = _round_up(V, _LANE)
    E = params["enc_emb"].shape[-1]

    def pad_gates(w, rows_pad):
        rows = w.shape[0]
        w3 = w.reshape(rows, 3, H)
        w3 = jnp.pad(w3, ((0, rows_pad - rows), (0, 0), (0, Hp - H)))
        return w3.reshape(rows_pad, 3 * Hp)

    def pad_layer(lp, in_dim_pad):
        return {
            "w_ih": pad_gates(lp["w_ih"], in_dim_pad),
            "w_hh": pad_gates(lp["w_hh"], Hp),
            "b_ih": pad_gates(lp["b_ih"], 1),
            "b_hh": pad_gates(lp["b_hh"], 1),
        }

    kp = {
        "enc_emb": params["enc_emb"],
        "dec_emb": params["dec_emb"],
        "enc_gru": [],
        "dec_gru": [],
        "out_w": jnp.pad(params["out_w"], ((0, Hp - H), (0, Vp - V))),
        "out_b": jnp.pad(params["out_b"], ((0, 0), (0, Vp - V)),
                         constant_values=_NEG_BIG),
    }
    for which in ("enc_gru", "dec_gru"):
        for li, lp in enumerate(params[which]):
            in_dim_pad = E if li == 0 else Hp
            kp[which].append(pad_layer(lp, in_dim_pad))
    return kp


def _run_stacked_gru(x_flat, h0_layers, layer_params):
    """Stacked unidirectional GRU on flattened time-major activations."""
    h_finals = []
    layer_in = x_flat
    for li, lp in enumerate(layer_params):
        layer_out, h_t = gru_layer(layer_in, h0_layers[li],
                                   lp["w_ih"], lp["w_hh"], lp["b_ih"], lp["b_hh"])
        h_finals.append(h_t)
        layer_in = layer_out
    return layer_in, jnp.stack(h_finals, axis=0)      # (T*Bp, Hp), (L, Bp, Hp)


# ---------------------------------------------------------------------------
# Seq2seq forward
# ---------------------------------------------------------------------------
@functools.partial(jax.jit, static_argnames=("num_layer", "hidden_size", "target_vocab"))
def seq2seq_forward(kparams, input_ids, target_ids, input_len, target_len,
                    *, num_layer, hidden_size, target_vocab):
    """Mirrors Seq2seq.forward(input, target, input_len, target_len)."""
    del input_len, target_len   # TODO(synk): length masking / packing not reproduced
    B, T_in = input_ids.shape
    T_out = target_ids.shape[1]
    H, V = hidden_size, target_vocab
    Hp, Vp = kparams["out_w"].shape
    Bp = _round_up(B, _SUBLANE)

    def pad_ids(ids):
        return jnp.pad(ids, ((0, Bp - B), (0, 0)))      # pad batch rows with token 0

    in_ids = pad_ids(input_ids)                         # (Bp, T_in)
    tg_ids = pad_ids(target_ids)                        # (Bp, T_out)

    # ---------------- Encoder ----------------
    # Gather directly time-major and flatten: row = t*Bp + b.
    enc_x = jnp.take(kparams["enc_emb"], in_ids.T, axis=0).reshape(T_in * Bp, -1)
    h0 = jnp.zeros((num_layer, Bp, Hp), jnp.float32)
    enc_out_flat, enc_hidden = _run_stacked_gru(enc_x, h0, kparams["enc_gru"])
    encoder_outputs = (enc_out_flat.reshape(T_in, Bp, Hp)
                       .transpose(1, 0, 2)[:B, :, :H])              # (B, T_in, H)

    # ---------------- Decoder (full teacher forcing) ----------------
    dec_x = jnp.take(kparams["dec_emb"], tg_ids.T, axis=0).reshape(T_out * Bp, -1)
    dec_out_flat, dec_hidden = _run_stacked_gru(dec_x, enc_hidden, kparams["dec_gru"])
    scores_flat = project_logsoftmax(dec_out_flat, kparams["out_w"], kparams["out_b"])
    decoder_outputs = (scores_flat.reshape(T_out, Bp, Vp)
                       .transpose(1, 0, 2)[:B, :, :V])              # (B, T_out, V)

    encoder_hidden = enc_hidden[:, :B, :H]
    decoder_hidden = dec_hidden[:, :B, :H]
    return decoder_outputs, decoder_hidden, encoder_outputs, encoder_hidden


# ---------------------------------------------------------------------------
# Pure-JAX reference (lax.scan GRU, unpadded params) for correctness check
# ---------------------------------------------------------------------------
def _ref_gru_layer(x_tbe, h0, lp):
    H = h0.shape[-1]

    def step(h, x):
        gi = x @ lp["w_ih"] + lp["b_ih"]
        gh = h @ lp["w_hh"] + lp["b_hh"]
        r = jax.nn.sigmoid(gi[:, :H] + gh[:, :H])
        z = jax.nn.sigmoid(gi[:, H:2 * H] + gh[:, H:2 * H])
        n = jnp.tanh(gi[:, 2 * H:] + r * gh[:, 2 * H:])
        h_new = (1.0 - z) * n + z * h
        return h_new, h_new

    h_t, outs = jax.lax.scan(step, h0, x_tbe)
    return outs, h_t


def _ref_forward(params, input_ids, target_ids, num_layer, hidden_size):
    B = input_ids.shape[0]
    x = jnp.transpose(jnp.take(params["enc_emb"], input_ids, axis=0), (1, 0, 2))
    h0 = jnp.zeros((num_layer, B, hidden_size), jnp.float32)
    hs = []
    for li in range(num_layer):
        x, ht = _ref_gru_layer(x, h0[li], params["enc_gru"][li])
        hs.append(ht)
    enc_hidden = jnp.stack(hs, 0)
    enc_out = jnp.transpose(x, (1, 0, 2))
    y = jnp.transpose(jnp.take(params["dec_emb"], target_ids, axis=0), (1, 0, 2))
    hs = []
    for li in range(num_layer):
        y, ht = _ref_gru_layer(y, enc_hidden[li], params["dec_gru"][li])
        hs.append(ht)
    dec_hidden = jnp.stack(hs, 0)
    logits = y @ params["out_w"] + params["out_b"]
    dec_out = jnp.transpose(jax.nn.log_softmax(logits, axis=-1), (1, 0, 2))
    return dec_out, dec_hidden, enc_out, enc_hidden


# ---------------------------------------------------------------------------
if __name__ == "__main__":
    B, T_in, T_out = 2, 8, 8
    input_vocab, target_vocab = 50, 50
    emb_size, hidden_size, num_layer = 32, 32, 1

    key = jax.random.PRNGKey(0)
    k_par, k_in, k_tg = jax.random.split(key, 3)

    params = init_seq2seq_params(k_par, input_vocab, target_vocab,
                                 emb_size, num_layer, hidden_size)
    kparams = prepare_kernel_params(params, hidden_size)

    input_ids = jax.random.randint(k_in, (B, T_in), 0, input_vocab, dtype=jnp.int32)
    target_ids = jax.random.randint(k_tg, (B, T_out), 0, target_vocab, dtype=jnp.int32)
    input_len = jnp.full((B,), T_in, jnp.int32)
    target_len = jnp.full((B,), T_out, jnp.int32)

    dec_out, dec_hid, enc_out, enc_hid = seq2seq_forward(
        params=None or kparams, input_ids=input_ids, target_ids=target_ids,
        input_len=input_len, target_len=target_len,
        num_layer=num_layer, hidden_size=hidden_size, target_vocab=target_vocab) \
        if False else seq2seq_forward(
            kparams, input_ids, target_ids, input_len, target_len,
            num_layer=num_layer, hidden_size=hidden_size, target_vocab=target_vocab)
    jax.block_until_ready((dec_out, dec_hid, enc_out, enc_hid))

    # Correctness vs pure-JAX (unpadded) reference.
    ref_dec_out, ref_dec_hid, ref_enc_out, ref_enc_hid = _ref_forward(
        params, input_ids, target_ids, num_layer, hidden_size)

    assert dec_out.shape == (B, T_out, target_vocab)
    assert dec_hid.shape == (num_layer, B, hidden_size)
    assert enc_out.shape == (B, T_in, hidden_size)
    assert enc_hid.shape == (num_layer, B, hidden_size)
    assert jnp.allclose(dec_out, ref_dec_out, atol=1e-4, rtol=1e-4)
    assert jnp.allclose(dec_hid, ref_dec_hid, atol=1e-4, rtol=1e-4)
    assert jnp.allclose(enc_out, ref_enc_out, atol=1e-4, rtol=1e-4)
    assert jnp.allclose(enc_hid, ref_enc_hid, atol=1e-4, rtol=1e-4)

    print("KERNEL_OK")
</pallas_src>

<mosaic_0001>
module attributes {stable_mosaic.version = 11 : i64} {
  func.func @_gru_seq_kernel(%arg0: memref<64x32xf32, #tpu.memory_space<vmem>>, %arg1: memref<8x128xf32, #tpu.memory_space<vmem>>, %arg2: memref<32x384xf32, #tpu.memory_space<vmem>>, %arg3: memref<128x384xf32, #tpu.memory_space<vmem>>, %arg4: memref<1x384xf32, #tpu.memory_space<vmem>>, %arg5: memref<1x384xf32, #tpu.memory_space<vmem>>, %arg6: memref<64x128xf32, #tpu.memory_space<vmem>>, %arg7: memref<8x128xf32, #tpu.memory_space<vmem>>, %arg8: memref<64x384xf32, #tpu.memory_space<vmem>>) attributes {dimension_semantics = [], scalar_prefetch = 0 : i64, scratch_operands = 1 : i64, tpu.core_type = #tpu.core_type<tc>} {
    %c0 = arith.constant 0 : index
    %c0_0 = arith.constant 0 : index
    %0 = vector.load %arg0[%c0, %c0_0] : memref<64x32xf32, #tpu.memory_space<vmem>>, vector<64x32xf32>
    %c0_1 = arith.constant 0 : index
    %c0_2 = arith.constant 0 : index
    %1 = vector.load %arg2[%c0_1, %c0_2] : memref<32x384xf32, #tpu.memory_space<vmem>>, vector<32x384xf32>
    %cst = arith.constant dense<0.000000e+00> : vector<64x384xf32>
    %2 = tpu.matmul %0, %1, %cst {dimension_numbers = #tpu.dot_dimension_numbers<[1], [0], [0], [1], [0, 0, 1, 1], [], []>} : vector<64x32xf32>, vector<32x384xf32>, vector<64x384xf32> -> vector<64x384xf32>
    %c0_3 = arith.constant 0 : index
    %c0_4 = arith.constant 0 : index
    %3 = vector.load %arg4[%c0_3, %c0_4] : memref<1x384xf32, #tpu.memory_space<vmem>>, vector<1x384xf32>
    %4 = vector.broadcast %3 : vector<1x384xf32> to vector<64x384xf32>
    %5 = arith.addf %2, %4 : vector<64x384xf32>
    %c0_5 = arith.constant 0 : index
    %c0_6 = arith.constant 0 : index
    %6 = vector.load %arg8[%c0_5, %c0_6] : memref<64x384xf32, #tpu.memory_space<vmem>>, vector<64x384xf32>
    tpu.vector_store %arg8[%c0_5, %c0_6], %5 {strides = array<i32>} : memref<64x384xf32, #tpu.memory_space<vmem>>, vector<64x384xf32>,
    %c0_7 = arith.constant 0 : index
    %c0_8 = arith.constant 0 : index
    %7 = vector.load %arg3[%c0_7, %c0_8] : memref<128x384xf32, #tpu.memory_space<vmem>>, vector<128x384xf32>
    %c0_9 = arith.constant 0 : index
    %c0_10 = arith.constant 0 : index
    %8 = vector.load %arg5[%c0_9, %c0_10] : memref<1x384xf32, #tpu.memory_space<vmem>>, vector<1x384xf32>
    %c0_11 = arith.constant 0 : index
    %c0_12 = arith.constant 0 : index
    %9 = vector.load %arg1[%c0_11, %c0_12] : memref<8x128xf32, #tpu.memory_space<vmem>>, vector<8x128xf32>
    %c0_i32 = arith.constant 0 : i32
    %c8_i32 = arith.constant 8 : i32
    %10 = arith.muli %c0_i32, %c8_i32 : i32
    %11 = tpu.assume_multiple %10, 8 : i32
    %12 = arith.index_cast %11 : i32 to index
    %c0_13 = arith.constant 0 : index
    %13 = vector.load %arg8[%12, %c0_13] : memref<64x384xf32, #tpu.memory_space<vmem>>, vector<8x384xf32>
    %cst_14 = arith.constant dense<0.000000e+00> : vector<8x384xf32>
    %14 = tpu.matmul %9, %7, %cst_14 {dimension_numbers = #tpu.dot_dimension_numbers<[1], [0], [0], [1], [0, 0, 1, 1], [], []>} : vector<8x128xf32>, vector<128x384xf32>, vector<8x384xf32> -> vector<8x384xf32>
    %15 = vector.broadcast %8 : vector<1x384xf32> to vector<8x384xf32>
    %16 = arith.addf %14, %15 : vector<8x384xf32>
    %17 = vector.extract_strided_slice %13 {offsets = [0, 0], sizes = [8, 128], strides = [1, 1]} : vector<8x384xf32> to vector<8x128xf32>
    %18 = vector.extract_strided_slice %13 {offsets = [0, 128], sizes = [8, 128], strides = [1, 1]} : vector<8x384xf32> to vector<8x128xf32>
    %19 = vector.extract_strided_slice %13 {offsets = [0, 256], sizes = [8, 128], strides = [1, 1]} : vector<8x384xf32> to vector<8x128xf32>
    %20 = vector.extract_strided_slice %16 {offsets = [0, 0], sizes = [8, 128], strides = [1, 1]} : vector<8x384xf32> to vector<8x128xf32>
    %21 = vector.extract_strided_slice %16 {offsets = [0, 128], sizes = [8, 128], strides = [1, 1]} : vector<8x384xf32> to vector<8x128xf32>
    %22 = vector.extract_strided_slice %16 {offsets = [0, 256], sizes = [8, 128], strides = [1, 1]} : vector<8x384xf32> to vector<8x128xf32>
    %23 = arith.addf %17, %20 : vector<8x128xf32>
    %24 = arith.negf %23 : vector<8x128xf32>
    %25 = math.exp %24 : vector<8x128xf32>
    %cst_15 = arith.constant 1.000000e+00 : f32
    %26 = vector.broadcast %cst_15 : f32 to vector<8x128xf32>
    %27 = arith.addf %26, %25 : vector<8x128xf32>
    %28 = arith.divf %26, %27 : vector<8x128xf32>
    %29 = arith.addf %18, %21 : vector<8x128xf32>
    %30 = arith.negf %29 : vector<8x128xf32>
    %31 = math.exp %30 : vector<8x128xf32>
    %cst_16 = arith.constant 1.000000e+00 : f32
    %32 = vector.broadcast %cst_16 : f32 to vector<8x128xf32>
    %33 = arith.addf %32, %31 : vector<8x128xf32>
    %34 = arith.divf %32, %33 : vector<8x128xf32>
    %35 = arith.mulf %28, %22 : vector<8x128xf32>
    %36 = arith.addf %19, %35 : vector<8x128xf32>
    %37 = math.tanh %36 : vector<8x128xf32>
    %cst_17 = arith.constant 1.000000e+00 : f32
    %38 = vector.broadcast %cst_17 : f32 to vector<8x128xf32>
    %39 = arith.subf %38, %34 : vector<8x128xf32>
    %40 = arith.mulf %39, %37 : vector<8x128xf32>
    %41 = arith.mulf %34, %9 : vector<8x128xf32>
    %42 = arith.addf %40, %41 : vector<8x128xf32>
    %43 = arith.index_cast %11 : i32 to index
    %c0_18 = arith.constant 0 : index
    %44 = vector.load %arg6[%43, %c0_18] : memref<64x128xf32, #tpu.memory_space<vmem>>, vector<8x128xf32>
    tpu.vector_store %arg6[%43, %c0_18], %42 {strides = array<i32>} : memref<64x128xf32, #tpu.memory_space<vmem>>, vector<8x128xf32>,
    %c1_i32 = arith.constant 1 : i32
    %c8_i32_19 = arith.constant 8 : i32
    %45 = arith.muli %c1_i32, %c8_i32_19 : i32
    %46 = tpu.assume_multiple %45, 8 : i32
    %47 = arith.index_cast %46 : i32 to index
    %c0_20 = arith.constant 0 : index
    %48 = vector.load %arg8[%47, %c0_20] : memref<64x384xf32, #tpu.memory_space<vmem>>, vector<8x384xf32>
    %cst_21 = arith.constant dense<0.000000e+00> : vector<8x384xf32>
    %49 = tpu.matmul %42, %7, %cst_21 {dimension_numbers = #tpu.dot_dimension_numbers<[1], [0], [0], [1], [0, 0, 1, 1], [], []>} : vector<8x128xf32>, vector<128x384xf32>, vector<8x384xf32> -> vector<8x384xf32>
    %50 = vector.broadcast %8 : vector<1x384xf32> to vector<8x384xf32>
    %51 = arith.addf %49, %50 : vector<8x384xf32>
    %52 = vector.extract_strided_slice %48 {offsets = [0, 0], sizes = [8, 128], strides = [1, 1]} : vector<8x384xf32> to vector<8x128xf32>
    %53 = vector.extract_strided_slice %48 {offsets = [0, 128], sizes = [8, 128], strides = [1, 1]} : vector<8x384xf32> to vector<8x128xf32>
    %54 = vector.extract_strided_slice %48 {offsets = [0, 256], sizes = [8, 128], strides = [1, 1]} : vector<8x384xf32> to vector<8x128xf32>
    %55 = vector.extract_strided_slice %51 {offsets = [0, 0], sizes = [8, 128], strides = [1, 1]} : vector<8x384xf32> to vector<8x128xf32>
    %56 = vector.extract_strided_slice %51 {offsets = [0, 128], sizes = [8, 128], strides = [1, 1]} : vector<8x384xf32> to vector<8x128xf32>
    %57 = vector.extract_strided_slice %51 {offsets = [0, 256], sizes = [8, 128], strides = [1, 1]} : vector<8x384xf32> to vector<8x128xf32>
    %58 = arith.addf %52, %55 : vector<8x128xf32>
    %59 = arith.negf %58 : vector<8x128xf32>
    %60 = math.exp %59 : vector<8x128xf32>
    %cst_22 = arith.constant 1.000000e+00 : f32
    %61 = vector.broadcast %cst_22 : f32 to vector<8x128xf32>
    %62 = arith.addf %61, %60 : vector<8x128xf32>
    %63 = arith.divf %61, %62 : vector<8x128xf32>
    %64 = arith.addf %53, %56 : vector<8x128xf32>
    %65 = arith.negf %64 : vector<8x128xf32>
    %66 = math.exp %65 : vector<8x128xf32>
    %cst_23 = arith.constant 1.000000e+00 : f32
    %67 = vector.broadcast %cst_23 : f32 to vector<8x128xf32>
    %68 = arith.addf %67, %66 : vector<8x128xf32>
    %69 = arith.divf %67, %68 : vector<8x128xf32>
    %70 = arith.mulf %63, %57 : vector<8x128xf32>
    %71 = arith.addf %54, %70 : vector<8x128xf32>
    %72 = math.tanh %71 : vector<8x128xf32>
    %cst_24 = arith.constant 1.000000e+00 : f32
    %73 = vector.broadcast %cst_24 : f32 to vector<8x128xf32>
    %74 = arith.subf %73, %69 : vector<8x128xf32>
    %75 = arith.mulf %74, %72 : vector<8x128xf32>
    %76 = arith.mulf %69, %42 : vector<8x128xf32>
    %77 = arith.addf %75, %76 : vector<8x128xf32>
    %78 = arith.index_cast %46 : i32 to index
    %c0_25 = arith.constant 0 : index
    %79 = vector.load %arg6[%78, %c0_25] : memref<64x128xf32, #tpu.memory_space<vmem>>, vector<8x128xf32>
    tpu.vector_store %arg6[%78, %c0_25], %77 {strides = array<i32>} : memref<64x128xf32, #tpu.memory_space<vmem>>, vector<8x128xf32>,
    %c2_i32 = arith.constant 2 : i32
    %c8_i32_26 = arith.constant 8 : i32
    %80 = arith.muli %c2_i32, %c8_i32_26 : i32
    %81 = tpu.assume_multiple %80, 8 : i32
    %82 = arith.index_cast %81 : i32 to index
    %c0_27 = arith.constant 0 : index
    %83 = vector.load %arg8[%82, %c0_27] : memref<64x384xf32, #tpu.memory_space<vmem>>, vector<8x384xf32>
    %cst_28 = arith.constant dense<0.000000e+00> : vector<8x384xf32>
    %84 = tpu.matmul %77, %7, %cst_28 {dimension_numbers = #tpu.dot_dimension_numbers<[1], [0], [0], [1], [0, 0, 1, 1], [], []>} : vector<8x128xf32>, vector<128x384xf32>, vector<8x384xf32> -> vector<8x384xf32>
    %85 = vector.broadcast %8 : vector<1x384xf32> to vector<8x384xf32>
    %86 = arith.addf %84, %85 : vector<8x384xf32>
    %87 = vector.extract_strided_slice %83 {offsets = [0, 0], sizes = [8, 128], strides = [1, 1]} : vector<8x384xf32> to vector<8x128xf32>
    %88 = vector.extract_strided_slice %83 {offsets = [0, 128], sizes = [8, 128], strides = [1, 1]} : vector<8x384xf32> to vector<8x128xf32>
    %89 = vector.extract_strided_slice %83 {offsets = [0, 256], sizes = [8, 128], strides = [1, 1]} : vector<8x384xf32> to vector<8x128xf32>
    %90 = vector.extract_strided_slice %86 {offsets = [0, 0], sizes = [8, 128], strides = [1, 1]} : vector<8x384xf32> to vector<8x128xf32>
    %91 = vector.extract_strided_slice %86 {offsets = [0, 128], sizes = [8, 128], strides = [1, 1]} : vector<8x384xf32> to vector<8x128xf32>
    %92 = vector.extract_strided_slice %86 {offsets = [0, 256], sizes = [8, 128], strides = [1, 1]} : vector<8x384xf32> to vector<8x128xf32>
    %93 = arith.addf %87, %90 : vector<8x128xf32>
    %94 = arith.negf %93 : vector<8x128xf32>
    %95 = math.exp %94 : vector<8x128xf32>
    %cst_29 = arith.constant 1.000000e+00 : f32
    %96 = vector.broadcast %cst_29 : f32 to vector<8x128xf32>
    %97 = arith.addf %96, %95 : vector<8x128xf32>
    %98 = arith.divf %96, %97 : vector<8x128xf32>
    %99 = arith.addf %88, %91 : vector<8x128xf32>
    %100 = arith.negf %99 : vector<8x128xf32>
    %101 = math.exp %100 : vector<8x128xf32>
    %cst_30 = arith.constant 1.000000e+00 : f32
    %102 = vector.broadcast %cst_30 : f32 to vector<8x128xf32>
    %103 = arith.addf %102, %101 : vector<8x128xf32>
    %104 = arith.divf %102, %103 : vector<8x128xf32>
    %105 = arith.mulf %98, %92 : vector<8x128xf32>
    %106 = arith.addf %89, %105 : vector<8x128xf32>
    %107 = math.tanh %106 : vector<8x128xf32>
    %cst_31 = arith.constant 1.000000e+00 : f32
    %108 = vector.broadcast %cst_31 : f32 to vector<8x128xf32>
    %109 = arith.subf %108, %104 : vector<8x128xf32>
    %110 = arith.mulf %109, %107 : vector<8x128xf32>
    %111 = arith.mulf %104, %77 : vector<8x128xf32>
    %112 = arith.addf %110, %111 : vector<8x128xf32>
    %113 = arith.index_cast %81 : i32 to index
    %c0_32 = arith.constant 0 : index
    %114 = vector.load %arg6[%113, %c0_32] : memref<64x128xf32, #tpu.memory_space<vmem>>, vector<8x128xf32>
    tpu.vector_store %arg6[%113, %c0_32], %112 {strides = array<i32>} : memref<64x128xf32, #tpu.memory_space<vmem>>, vector<8x128xf32>,
    %c3_i32 = arith.constant 3 : i32
    %c8_i32_33 = arith.constant 8 : i32
    %115 = arith.muli %c3_i32, %c8_i32_33 : i32
    %116 = tpu.assume_multiple %115, 8 : i32
    %117 = arith.index_cast %116 : i32 to index
    %c0_34 = arith.constant 0 : index
    %118 = vector.load %arg8[%117, %c0_34] : memref<64x384xf32, #tpu.memory_space<vmem>>, vector<8x384xf32>
    %cst_35 = arith.constant dense<0.000000e+00> : vector<8x384xf32>
    %119 = tpu.matmul %112, %7, %cst_35 {dimension_numbers = #tpu.dot_dimension_numbers<[1], [0], [0], [1], [0, 0, 1, 1], [], []>} : vector<8x128xf32>, vector<128x384xf32>, vector<8x384xf32> -> vector<8x384xf32>
    %120 = vector.broadcast %8 : vector<1x384xf32> to vector<8x384xf32>
    %121 = arith.addf %119, %120 : vector<8x384xf32>
    %122 = vector.extract_strided_slice %118 {offsets = [0, 0], sizes = [8, 128], strides = [1, 1]} : vector<8x384xf32> to vector<8x128xf32>
    %123 = vector.extract_strided_slice %118 {offsets = [0, 128], sizes = [8, 128], strides = [1, 1]} : vector<8x384xf32> to vector<8x128xf32>
    %124 = vector.extract_strided_slice %118 {offsets = [0, 256], sizes = [8, 128], strides = [1, 1]} : vector<8x384xf32> to vector<8x128xf32>
    %125 = vector.extract_strided_slice %121 {offsets = [0, 0], sizes = [8, 128], strides = [1, 1]} : vector<8x384xf32> to vector<8x128xf32>
    %126 = vector.extract_strided_slice %121 {offsets = [0, 128], sizes = [8, 128], strides = [1, 1]} : vector<8x384xf32> to vector<8x128xf32>
    %127 = vector.extract_strided_slice %121 {offsets = [0, 256], sizes = [8, 128], strides = [1, 1]} : vector<8x384xf32> to vector<8x128xf32>
    %128 = arith.addf %122, %125 : vector<8x128xf32>
    %129 = arith.negf %128 : vector<8x128xf32>
    %130 = math.exp %129 : vector<8x128xf32>
    %cst_36 = arith.constant 1.000000e+00 : f32
    %131 = vector.broadcast %cst_36 : f32 to vector<8x128xf32>
    %132 = arith.addf %131, %130 : vector<8x128xf32>
    %133 = arith.divf %131, %132 : vector<8x128xf32>
    %134 = arith.addf %123, %126 : vector<8x128xf32>
    %135 = arith.negf %134 : vector<8x128xf32>
    %136 = math.exp %135 : vector<8x128xf32>
    %cst_37 = arith.constant 1.000000e+00 : f32
    %137 = vector.broadcast %cst_37 : f32 to vector<8x128xf32>
    %138 = arith.addf %137, %136 : vector<8x128xf32>
    %139 = arith.divf %137, %138 : vector<8x128xf32>
    %140 = arith.mulf %133, %127 : vector<8x128xf32>
    %141 = arith.addf %124, %140 : vector<8x128xf32>
    %142 = math.tanh %141 : vector<8x128xf32>
    %cst_38 = arith.constant 1.000000e+00 : f32
    %143 = vector.broadcast %cst_38 : f32 to vector<8x128xf32>
    %144 = arith.subf %143, %139 : vector<8x128xf32>
    %145 = arith.mulf %144, %142 : vector<8x128xf32>
    %146 = arith.mulf %139, %112 : vector<8x128xf32>
    %147 = arith.addf %145, %146 : vector<8x128xf32>
    %148 = arith.index_cast %116 : i32 to index
    %c0_39 = arith.constant 0 : index
    %149 = vector.load %arg6[%148, %c0_39] : memref<64x128xf32, #tpu.memory_space<vmem>>, vector<8x128xf32>
    tpu.vector_store %arg6[%148, %c0_39], %147 {strides = array<i32>} : memref<64x128xf32, #tpu.memory_space<vmem>>, vector<8x128xf32>,
    %c4_i32 = arith.constant 4 : i32
    %c8_i32_40 = arith.constant 8 : i32
    %150 = arith.muli %c4_i32, %c8_i32_40 : i32
    %151 = tpu.assume_multiple %150, 8 : i32
    %152 = arith.index_cast %151 : i32 to index
    %c0_41 = arith.constant 0 : index
    %153 = vector.load %arg8[%152, %c0_41] : memref<64x384xf32, #tpu.memory_space<vmem>>, vector<8x384xf32>
    %cst_42 = arith.constant dense<0.000000e+00> : vector<8x384xf32>
    %154 = tpu.matmul %147, %7, %cst_42 {dimension_numbers = #tpu.dot_dimension_numbers<[1], [0], [0], [1], [0, 0, 1, 1], [], []>} : vector<8x128xf32>, vector<128x384xf32>, vector<8x384xf32> -> vector<8x384xf32>
    %155 = vector.broadcast %8 : vector<1x384xf32> to vector<8x384xf32>
    %156 = arith.addf %154, %155 : vector<8x384xf32>
    %157 = vector.extract_strided_slice %153 {offsets = [0, 0], sizes = [8, 128], strides = [1, 1]} : vector<8x384xf32> to vector<8x128xf32>
    %158 = vector.extract_strided_slice %153 {offsets = [0, 128], sizes = [8, 128], strides = [1, 1]} : vector<8x384xf32> to vector<8x128xf32>
    %159 = vector.extract_strided_slice %153 {offsets = [0, 256], sizes = [8, 128], strides = [1, 1]} : vector<8x384xf32> to vector<8x128xf32>
    %160 = vector.extract_strided_slice %156 {offsets = [0, 0], sizes = [8, 128], strides = [1, 1]} : vector<8x384xf32> to vector<8x128xf32>
    %161 = vector.extract_strided_slice %156 {offsets = [0, 128], sizes = [8, 128], strides = [1, 1]} : vector<8x384xf32> to vector<8x128xf32>
    %162 = vector.extract_strided_slice %156 {offsets = [0, 256], sizes = [8, 128], strides = [1, 1]} : vector<8x384xf32> to vector<8x128xf32>
    %163 = arith.addf %157, %160 : vector<8x128xf32>
    %164 = arith.negf %163 : vector<8x128xf32>
    %165 = math.exp %164 : vector<8x128xf32>
    %cst_43 = arith.constant 1.000000e+00 : f32
    %166 = vector.broadcast %cst_43 : f32 to vector<8x128xf32>
    %167 = arith.addf %166, %165 : vector<8x128xf32>
    %168 = arith.divf %166, %167 : vector<8x128xf32>
    %169 = arith.addf %158, %161 : vector<8x128xf32>
    %170 = arith.negf %169 : vector<8x128xf32>
    %171 = math.exp %170 : vector<8x128xf32>
    %cst_44 = arith.constant 1.000000e+00 : f32
    %172 = vector.broadcast %cst_44 : f32 to vector<8x128xf32>
    %173 = arith.addf %172, %171 : vector<8x128xf32>
    %174 = arith.divf %172, %173 : vector<8x128xf32>
    %175 = arith.mulf %168, %162 : vector<8x128xf32>
    %176 = arith.addf %159, %175 : vector<8x128xf32>
    %177 = math.tanh %176 : vector<8x128xf32>
    %cst_45 = arith.constant 1.000000e+00 : f32
    %178 = vector.broadcast %cst_45 : f32 to vector<8x128xf32>
    %179 = arith.subf %178, %174 : vector<8x128xf32>
    %180 = arith.mulf %179, %177 : vector<8x128xf32>
    %181 = arith.mulf %174, %147 : vector<8x128xf32>
    %182 = arith.addf %180, %181 : vector<8x128xf32>
    %183 = arith.index_cast %151 : i32 to index
    %c0_46 = arith.constant 0 : index
    %184 = vector.load %arg6[%183, %c0_46] : memref<64x128xf32, #tpu.memory_space<vmem>>, vector<8x128xf32>
    tpu.vector_store %arg6[%183, %c0_46], %182 {strides = array<i32>} : memref<64x128xf32, #tpu.memory_space<vmem>>, vector<8x128xf32>,
    %c5_i32 = arith.constant 5 : i32
    %c8_i32_47 = arith.constant 8 : i32
    %185 = arith.muli %c5_i32, %c8_i32_47 : i32
    %186 = tpu.assume_multiple %185, 8 : i32
    %187 = arith.index_cast %186 : i32 to index
    %c0_48 = arith.constant 0 : index
    %188 = vector.load %arg8[%187, %c0_48] : memref<64x384xf32, #tpu.memory_space<vmem>>, vector<8x384xf32>
    %cst_49 = arith.constant dense<0.000000e+00> : vector<8x384xf32>
    %189 = tpu.matmul %182, %7, %cst_49 {dimension_numbers = #tpu.dot_dimension_numbers<[1], [0], [0], [1], [0, 0, 1, 1], [], []>} : vector<8x128xf32>, vector<128x384xf32>, vector<8x384xf32> -> vector<8x384xf32>
    %190 = vector.broadcast %8 : vector<1x384xf32> to vector<8x384xf32>
    %191 = arith.addf %189, %190 : vector<8x384xf32>
    %192 = vector.extract_strided_slice %188 {offsets = [0, 0], sizes = [8, 128], strides = [1, 1]} : vector<8x384xf32> to vector<8x128xf32>
    %193 = vector.extract_strided_slice %188 {offsets = [0, 128], sizes = [8, 128], strides = [1, 1]} : vector<8x384xf32> to vector<8x128xf32>
    %194 = vector.extract_strided_slice %188 {offsets = [0, 256], sizes = [8, 128], strides = [1, 1]} : vector<8x384xf32> to vector<8x128xf32>
    %195 = vector.extract_strided_slice %191 {offsets = [0, 0], sizes = [8, 128], strides = [1, 1]} : vector<8x384xf32> to vector<8x128xf32>
    %196 = vector.extract_strided_slice %191 {offsets = [0, 128], sizes = [8, 128], strides = [1, 1]} : vector<8x384xf32> to vector<8x128xf32>
    %197 = vector.extract_strided_slice %191 {offsets = [0, 256], sizes = [8, 128], strides = [1, 1]} : vector<8x384xf32> to vector<8x128xf32>
    %198 = arith.addf %192, %195 : vector<8x128xf32>
    %199 = arith.negf %198 : vector<8x128xf32>
    %200 = math.exp %199 : vector<8x128xf32>
    %cst_50 = arith.constant 1.000000e+00 : f32
    %201 = vector.broadcast %cst_50 : f32 to vector<8x128xf32>
    %202 = arith.addf %201, %200 : vector<8x128xf32>
    %203 = arith.divf %201, %202 : vector<8x128xf32>
    %204 = arith.addf %193, %196 : vector<8x128xf32>
    %205 = arith.negf %204 : vector<8x128xf32>
    %206 = math.exp %205 : vector<8x128xf32>
    %cst_51 = arith.constant 1.000000e+00 : f32
    %207 = vector.broadcast %cst_51 : f32 to vector<8x128xf32>
    %208 = arith.addf %207, %206 : vector<8x128xf32>
    %209 = arith.divf %207, %208 : vector<8x128xf32>
    %210 = arith.mulf %203, %197 : vector<8x128xf32>
    %211 = arith.addf %194, %210 : vector<8x128xf32>
    %212 = math.tanh %211 : vector<8x128xf32>
    %cst_52 = arith.constant 1.000000e+00 : f32
    %213 = vector.broadcast %cst_52 : f32 to vector<8x128xf32>
    %214 = arith.subf %213, %209 : vector<8x128xf32>
    %215 = arith.mulf %214, %212 : vector<8x128xf32>
    %216 = arith.mulf %209, %182 : vector<8x128xf32>
    %217 = arith.addf %215, %216 : vector<8x128xf32>
    %218 = arith.index_cast %186 : i32 to index
    %c0_53 = arith.constant 0 : index
    %219 = vector.load %arg6[%218, %c0_53] : memref<64x128xf32, #tpu.memory_space<vmem>>, vector<8x128xf32>
    tpu.vector_store %arg6[%218, %c0_53], %217 {strides = array<i32>} : memref<64x128xf32, #tpu.memory_space<vmem>>, vector<8x128xf32>,
    %c6_i32 = arith.constant 6 : i32
    %c8_i32_54 = arith.constant 8 : i32
    %220 = arith.muli %c6_i32, %c8_i32_54 : i32
    %221 = tpu.assume_multiple %220, 8 : i32
    %222 = arith.index_cast %221 : i32 to index
    %c0_55 = arith.constant 0 : index
    %223 = vector.load %arg8[%222, %c0_55] : memref<64x384xf32, #tpu.memory_space<vmem>>, vector<8x384xf32>
    %cst_56 = arith.constant dense<0.000000e+00> : vector<8x384xf32>
    %224 = tpu.matmul %217, %7, %cst_56 {dimension_numbers = #tpu.dot_dimension_numbers<[1], [0], [0], [1], [0, 0, 1, 1], [], []>} : vector<8x128xf32>, vector<128x384xf32>, vector<8x384xf32> -> vector<8x384xf32>
    %225 = vector.broadcast %8 : vector<1x384xf32> to vector<8x384xf32>
    %226 = arith.addf %224, %225 : vector<8x384xf32>
    %227 = vector.extract_strided_slice %223 {offsets = [0, 0], sizes = [8, 128], strides = [1, 1]} : vector<8x384xf32> to vector<8x128xf32>
    %228 = vector.extract_strided_slice %223 {offsets = [0, 128], sizes = [8, 128], strides = [1, 1]} : vector<8x384xf32> to vector<8x128xf32>
    %229 = vector.extract_strided_slice %223 {offsets = [0, 256], sizes = [8, 128], strides = [1, 1]} : vector<8x384xf32> to vector<8x128xf32>
    %230 = vector.extract_strided_slice %226 {offsets = [0, 0], sizes = [8, 128], strides = [1, 1]} : vector<8x384xf32> to vector<8x128xf32>
    %231 = vector.extract_strided_slice %226 {offsets = [0, 128], sizes = [8, 128], strides = [1, 1]} : vector<8x384xf32> to vector<8x128xf32>
    %232 = vector.extract_strided_slice %226 {offsets = [0, 256], sizes = [8, 128], strides = [1, 1]} : vector<8x384xf32> to vector<8x128xf32>
    %233 = arith.addf %227, %230 : vector<8x128xf32>
    %234 = arith.negf %233 : vector<8x128xf32>
    %235 = math.exp %234 : vector<8x128xf32>
    %cst_57 = arith.constant 1.000000e+00 : f32
    %236 = vector.broadcast %cst_57 : f32 to vector<8x128xf32>
    %237 = arith.addf %236, %235 : vector<8x128xf32>
    %238 = arith.divf %236, %237 : vector<8x128xf32>
    %239 = arith.addf %228, %231 : vector<8x128xf32>
    %240 = arith.negf %239 : vector<8x128xf32>
    %241 = math.exp %240 : vector<8x128xf32>
    %cst_58 = arith.constant 1.000000e+00 : f32
    %242 = vector.broadcast %cst_58 : f32 to vector<8x128xf32>
    %243 = arith.addf %242, %241 : vector<8x128xf32>
    %244 = arith.divf %242, %243 : vector<8x128xf32>
    %245 = arith.mulf %238, %232 : vector<8x128xf32>
    %246 = arith.addf %229, %245 : vector<8x128xf32>
    %247 = math.tanh %246 : vector<8x128xf32>
    %cst_59 = arith.constant 1.000000e+00 : f32
    %248 = vector.broadcast %cst_59 : f32 to vector<8x128xf32>
    %249 = arith.subf %248, %244 : vector<8x128xf32>
    %250 = arith.mulf %249, %247 : vector<8x128xf32>
    %251 = arith.mulf %244, %217 : vector<8x128xf32>
    %252 = arith.addf %250, %251 : vector<8x128xf32>
    %253 = arith.index_cast %221 : i32 to index
    %c0_60 = arith.constant 0 : index
    %254 = vector.load %arg6[%253, %c0_60] : memref<64x128xf32, #tpu.memory_space<vmem>>, vector<8x128xf32>
    tpu.vector_store %arg6[%253, %c0_60], %252 {strides = array<i32>} : memref<64x128xf32, #tpu.memory_space<vmem>>, vector<8x128xf32>,
    %c7_i32 = arith.constant 7 : i32
    %c8_i32_61 = arith.constant 8 : i32
    %255 = arith.muli %c7_i32, %c8_i32_61 : i32
    %256 = tpu.assume_multiple %255, 8 : i32
    %257 = arith.index_cast %256 : i32 to index
    %c0_62 = arith.constant 0 : index
    %258 = vector.load %arg8[%257, %c0_62] : memref<64x384xf32, #tpu.memory_space<vmem>>, vector<8x384xf32>
    %cst_63 = arith.constant dense<0.000000e+00> : vector<8x384xf32>
    %259 = tpu.matmul %252, %7, %cst_63 {dimension_numbers = #tpu.dot_dimension_numbers<[1], [0], [0], [1], [0, 0, 1, 1], [], []>} : vector<8x128xf32>, vector<128x384xf32>, vector<8x384xf32> -> vector<8x384xf32>
    %260 = vector.broadcast %8 : vector<1x384xf32> to vector<8x384xf32>
    %261 = arith.addf %259, %260 : vector<8x384xf32>
    %262 = vector.extract_strided_slice %258 {offsets = [0, 0], sizes = [8, 128], strides = [1, 1]} : vector<8x384xf32> to vector<8x128xf32>
    %263 = vector.extract_strided_slice %258 {offsets = [0, 128], sizes = [8, 128], strides = [1, 1]} : vector<8x384xf32> to vector<8x128xf32>
    %264 = vector.extract_strided_slice %258 {offsets = [0, 256], sizes = [8, 128], strides = [1, 1]} : vector<8x384xf32> to vector<8x128xf32>
    %265 = vector.extract_strided_slice %261 {offsets = [0, 0], sizes = [8, 128], strides = [1, 1]} : vector<8x384xf32> to vector<8x128xf32>
    %266 = vector.extract_strided_slice %261 {offsets = [0, 128], sizes = [8, 128], strides = [1, 1]} : vector<8x384xf32> to vector<8x128xf32>
    %267 = vector.extract_strided_slice %261 {offsets = [0, 256], sizes = [8, 128], strides = [1, 1]} : vector<8x384xf32> to vector<8x128xf32>
    %268 = arith.addf %262, %265 : vector<8x128xf32>
    %269 = arith.negf %268 : vector<8x128xf32>
    %270 = math.exp %269 : vector<8x128xf32>
    %cst_64 = arith.constant 1.000000e+00 : f32
    %271 = vector.broadcast %cst_64 : f32 to vector<8x128xf32>
    %272 = arith.addf %271, %270 : vector<8x128xf32>
    %273 = arith.divf %271, %272 : vector<8x128xf32>
    %274 = arith.addf %263, %266 : vector<8x128xf32>
    %275 = arith.negf %274 : vector<8x128xf32>
    %276 = math.exp %275 : vector<8x128xf32>
    %cst_65 = arith.constant 1.000000e+00 : f32
    %277 = vector.broadcast %cst_65 : f32 to vector<8x128xf32>
    %278 = arith.addf %277, %276 : vector<8x128xf32>
    %279 = arith.divf %277, %278 : vector<8x128xf32>
    %280 = arith.mulf %273, %267 : vector<8x128xf32>
    %281 = arith.addf %264, %280 : vector<8x128xf32>
    %282 = math.tanh %281 : vector<8x128xf32>
    %cst_66 = arith.constant 1.000000e+00 : f32
    %283 = vector.broadcast %cst_66 : f32 to vector<8x128xf32>
    %284 = arith.subf %283, %279 : vector<8x128xf32>
    %285 = arith.mulf %284, %282 : vector<8x128xf32>
    %286 = arith.mulf %279, %252 : vector<8x128xf32>
    %287 = arith.addf %285, %286 : vector<8x128xf32>
    %288 = arith.index_cast %256 : i32 to index
    %c0_67 = arith.constant 0 : index
    %289 = vector.load %arg6[%288, %c0_67] : memref<64x128xf32, #tpu.memory_space<vmem>>, vector<8x128xf32>
    tpu.vector_store %arg6[%288, %c0_67], %287 {strides = array<i32>} : memref<64x128xf32, #tpu.memory_space<vmem>>, vector<8x128xf32>,
    %c8_i32_68 = arith.constant 8 : i32
    %c0_69 = arith.constant 0 : index
    %c0_70 = arith.constant 0 : index
    %290 = vector.load %arg7[%c0_69, %c0_70] : memref<8x128xf32, #tpu.memory_space<vmem>>, vector<8x128xf32>
    tpu.vector_store %arg7[%c0_69, %c0_70], %287 {strides = array<i32>} : memref<8x128xf32, #tpu.memory_space<vmem>>, vector<8x128xf32>,
    return
  }
}

module attributes {stable_mosaic.version = 11 : i64} {
  func.func @_proj_logsoftmax_kernel(%arg0: i32, %arg1: memref<64x128xf32, #tpu.memory_space<vmem>>, %arg2: memref<128x128xf32, #tpu.memory_space<vmem>>, %arg3: memref<1x128xf32, #tpu.memory_space<vmem>>, %arg4: memref<64x128xf32, #tpu.memory_space<vmem>>) attributes {dimension_semantics = [#tpu.dimension_semantics<parallel>], iteration_bounds = array<i64: 1>, scalar_prefetch = 0 : i64, scratch_operands = 0 : i64, tpu.core_type = #tpu.core_type<tc>, window_params = [{transform_indices = @transform_0, window_bounds = array<i64: 64, 128>}, {pipeline_mode = #tpu.pipeline_mode<synchronous>, transform_indices = @transform_1, window_bounds = array<i64: 128, 128>}, {pipeline_mode = #tpu.pipeline_mode<synchronous>, transform_indices = @transform_2, window_bounds = array<i64: 1, 128>}, {transform_indices = @transform_3, window_bounds = array<i64: 64, 128>}]} {
    %c0 = arith.constant 0 : index
    %c0_0 = arith.constant 0 : index
    %0 = vector.load %arg1[%c0, %c0_0] : memref<64x128xf32, #tpu.memory_space<vmem>>, vector<64x128xf32>
    %c0_1 = arith.constant 0 : index
    %c0_2 = arith.constant 0 : index
    %1 = vector.load %arg2[%c0_1, %c0_2] : memref<128x128xf32, #tpu.memory_space<vmem>>, vector<128x128xf32>
    %cst = arith.constant dense<0.000000e+00> : vector<64x128xf32>
    %2 = tpu.matmul %0, %1, %cst {dimension_numbers = #tpu.dot_dimension_numbers<[1], [0], [0], [1], [0, 0, 1, 1], [], []>} : vector<64x128xf32>, vector<128x128xf32>, vector<64x128xf32> -> vector<64x128xf32>
    %c0_3 = arith.constant 0 : index
    %c0_4 = arith.constant 0 : index
    %3 = vector.load %arg3[%c0_3, %c0_4] : memref<1x128xf32, #tpu.memory_space<vmem>>, vector<1x128xf32>
    %4 = vector.broadcast %3 : vector<1x128xf32> to vector<64x128xf32>
    %5 = arith.addf %2, %4 : vector<64x128xf32>
    %cst_5 = arith.constant dense<0xFF800000> : vector<64xf32>
    %6 = vector.multi_reduction <maximumf>, %5, %cst_5 [1] : vector<64x128xf32> to vector<64xf32>
    %7 = vector.shape_cast %6 : vector<64xf32> to vector<64x1xf32>
    %8 = vector.broadcast %7 : vector<64x1xf32> to vector<64x128xf32>
    %9 = arith.subf %5, %8 : vector<64x128xf32>
    %10 = math.exp %9 : vector<64x128xf32>
    %cst_6 = arith.constant dense<0.000000e+00> : vector<64xf32>
    %11 = vector.multi_reduction <add>, %10, %cst_6 [1] : vector<64x128xf32> to vector<64xf32>
    %12 = vector.shape_cast %11 : vector<64xf32> to vector<64x1xf32>
    %13 = math.log %12 : vector<64x1xf32>
    %14 = arith.addf %13, %7 : vector<64x1xf32>
    %15 = vector.broadcast %14 : vector<64x1xf32> to vector<64x128xf32>
    %16 = arith.subf %5, %15 : vector<64x128xf32>
    %c0_7 = arith.constant 0 : index
    %c0_8 = arith.constant 0 : index
    %17 = vector.load %arg4[%c0_7, %c0_8] : memref<64x128xf32, #tpu.memory_space<vmem>>, vector<64x128xf32>
    tpu.vector_store %arg4[%c0_7, %c0_8], %16 {strides = array<i32>} : memref<64x128xf32, #tpu.memory_space<vmem>>, vector<64x128xf32>,
    return
  }
  func.func @transform_0(%arg0: i32) -> (i32, i32) {
    %c0_i32 = arith.constant 0 : i32
    %c0_i32_0 = arith.constant 0 : i32
    return %arg0, %c0_i32 : i32, i32
  }
  func.func @transform_1(%arg0: i32) -> (i32, i32) {
    %c0_i32 = arith.constant 0 : i32
    %c0_i32_0 = arith.constant 0 : i32
    %c0_i32_1 = arith.constant 0 : i32
    return %c0_i32, %c0_i32_0 : i32, i32
  }
  func.func @transform_2(%arg0: i32) -> (i32, i32) {
    %c0_i32 = arith.constant 0 : i32
    %c0_i32_0 = arith.constant 0 : i32
    %c0_i32_1 = arith.constant 0 : i32
    return %c0_i32, %c0_i32_0 : i32, i32
  }
  func.func @transform_3(%arg0: i32) -> (i32, i32) {
    %c0_i32 = arith.constant 0 : i32
    %c0_i32_0 = arith.constant 0 : i32
    return %arg0, %c0_i32 : i32, i32
  }
}

</mosaic_0001>

<llo_original>
// kernel: squeeze.1
$region0: #{squeeze.1}
  #allocation0 [shape = 's32[1]{0}', space=sflag, size = 0x4, scoped, tag = 'scoped memory for squeeze.1']
  %s0 = inlined_call_operand.<no memory space> [shape: f32[], index: 0, kind: input, shape index: {}]
  %s1 = inlined_call_operand.vmem [shape: f32[8,128], index: 1, kind: output, shape index: {}]
  %v2 = vstv %s0
  %3 = vst [vmem:[%s1] sm:$0xff] %v2

// kernel: seq2seq_forward.5
$region0: #{seq2seq_forward.5}
  #allocation0 [shape = 'u32[]', space=smem, size = 0x4, offset = 0x4, fixed_abs, tag = 'smem constant byte address 0x4 - core index']
  #allocation1 [shape = 'u32[144,128]{1,0:T(1,128)}', space=vmem, size = 0x12000, scoped, tag = 'internal scratch']
  %s0 = inlined_call_operand.vmem [shape: f32[64,128], index: 0, kind: input, shape index: {}]
  %s1 = inlined_call_operand.vmem [shape: f32[128,128], index: 1, kind: input, shape index: {}]
  %s2 = inlined_call_operand.vmem [shape: f32[1,128], index: 2, kind: input, shape index: {}]
  %s3 = inlined_call_operand.vmem [shape: f32[64,128], index: 3, kind: output, shape index: {}]
  %s4 = sld [smem:[#allocation0]]
  $region22: #{seq2seq_forward.5} parent=0
    _
  %s6 = ssub.s32 1, %s4
  %s7 = scalar_select 0, %s6, %s4
  // Predicated region
  $region2: #{seq2seq_forward.5} parent=0 // pred_check
    _
  $region3: #{seq2seq_forward.5} parent=0 // pred_check_branch
    %9 = sbr.rel (0) target = $region5
  $region4: #{seq2seq_forward.5} parent=0 // pred_region
    _
  $region5: #{seq2seq_forward.5} parent=0 // pred_fallthru
    _
  // Predicated region
  $region6: #{seq2seq_forward.5} parent=0 // pred_check
    _
  $region7: #{seq2seq_forward.5} parent=0 // pred_check_branch
    %11 = sbr.rel (0) target = $region9
  $region8: #{seq2seq_forward.5} parent=0 // pred_region
    _
  $region9: #{seq2seq_forward.5} parent=0 // pred_fallthru
    _
  // Predicated region
  $region10: #{seq2seq_forward.5} parent=0 // pred_check
    _
  $region11: #{seq2seq_forward.5} parent=0 // pred_check_branch
    %13 = sbr.rel (0) target = $region13
  $region12: #{seq2seq_forward.5} parent=0 // pred_region
    _
  $region13: #{seq2seq_forward.5} parent=0 // pred_fallthru
    _
  %v14 = vld [vmem:[%s0] sm:$0xff]
  %v15 = vld [vmem:[%s0 + $0x8] sm:$0xff]
  %v16 = vld [vmem:[%s0 + $0x10] sm:$0xff]
  %v17 = vld [vmem:[%s0 + $0x18] sm:$0xff]
  %v18 = vld [vmem:[%s0 + $0x20] sm:$0xff]
  %v19 = vld [vmem:[%s0 + $0x28] sm:$0xff]
  %v20 = vld [vmem:[%s0 + $0x30] sm:$0xff]
  %v21 = vld [vmem:[%s0 + $0x38] sm:$0xff]
  %v22 = vld [vmem:[%s1] sm:$0xff]
  %v23 = vld [vmem:[%s1 + $0x8] sm:$0xff]
  %v24 = vld [vmem:[%s1 + $0x10] sm:$0xff]
  %v25 = vld [vmem:[%s1 + $0x18] sm:$0xff]
  %v26 = vld [vmem:[%s1 + $0x20] sm:$0xff]
  %v27 = vld [vmem:[%s1 + $0x28] sm:$0xff]
  %v28 = vld [vmem:[%s1 + $0x30] sm:$0xff]
  %v29 = vld [vmem:[%s1 + $0x38] sm:$0xff]
  %v30 = vld [vmem:[%s1 + $0x40] sm:$0xff]
  %v31 = vld [vmem:[%s1 + $0x48] sm:$0xff]
  %v32 = vld [vmem:[%s1 + $0x50] sm:$0xff]
  %v33 = vld [vmem:[%s1 + $0x58] sm:$0xff]
  %v34 = vld [vmem:[%s1 + $0x60] sm:$0xff]
  %v35 = vld [vmem:[%s1 + $0x68] sm:$0xff]
  %v36 = vld [vmem:[%s1 + $0x70] sm:$0xff]
  %v37 = vld [vmem:[%s1 + $0x78] sm:$0xff]
  %v38 = vld [vmem:[%s2] sm:$0x1]
  %v40 = vlaneseq
  %v41 = vshrl.u32 %v40, 7
  %v42 = vsub.s32 0, %v41
  %v43 = vrot.slane %v38, %v42
  %45 = vmatprep.subr.mxu0 0.0
  %46 = vmatpush1.msra.mxu0 %v22
  %47 = vmatprep.subr.mxu0 0.0
  %48 = vmatpush1.msra.mxu0 %v23
  %49 = vmatprep.subr.mxu0 0.0
  %50 = vmatpush1.msra.mxu0 %v24
  %51 = vmatprep.subr.mxu0 0.0
  %52 = vmatpush1.msra.mxu0 %v25
  %53 = vmatprep.subr.mxu0 0.0
  %54 = vmatpush1.msra.mxu0 %v26
  %55 = vmatprep.subr.mxu0 0.0
  %56 = vmatpush1.msra.mxu0 %v27
  %57 = vmatprep.subr.mxu0 0.0
  %58 = vmatpush1.msra.mxu0 %v28
  %59 = vmatprep.subr.mxu0 0.0
  %60 = vmatpush1.msra.mxu0 %v29
  %61 = vmatprep.subr.mxu0 0.0
  %62 = vmatpush1.msra.mxu0 %v30
  %63 = vmatprep.subr.mxu0 0.0
  %64 = vmatpush1.msra.mxu0 %v31
  %65 = vmatprep.subr.mxu0 0.0
  %66 = vmatpush1.msra.mxu0 %v32
  %67 = vmatprep.subr.mxu0 0.0
  %68 = vmatpush1.msra.mxu0 %v33
  %69 = vmatprep.subr.mxu0 0.0
  %70 = vmatpush1.msra.mxu0 %v34
  %71 = vmatprep.subr.mxu0 0.0
  %72 = vmatpush1.msra.mxu0 %v35
  %73 = vmatprep.subr.mxu0 0.0
  %74 = vmatpush1.msra.mxu0 %v36
  %75 = vmatprep.subr.mxu0 0.0
  %76 = vmatpush1.msra.mxu0 %v37
  %77 = vmatprep.subr.mxu0 0.0
  %78 = vmatpush1.msra.mxu0 0.0
  %79 = vmatprep.subr.mxu0 0.0
  %80 = vmatpush1.msra.mxu0 0.0
  %81 = vmatprep.subr.mxu0 0.0
  %82 = vmatpush1.msra.mxu0 0.0
  %83 = vmatprep.subr.mxu0 0.0
  %84 = vmatpush1.msra.mxu0 0.0
  %85 = vmatprep.subr.mxu0 0.0
  %86 = vmatpush1.msra.mxu0 0.0
  %87 = vmatprep.subr.mxu0 0.0
  %88 = vmatpush1.msra.mxu0 0.0
  %89 = vmatprep.subr.mxu0 0.0
  %90 = vmatpush1.msra.mxu0 0.0
  %91 = vmatprep.subr.mxu0 0.0
  %92 = vmatpush1.msra.mxu0 0.0
  %93 = vmatprep.subr.mxu0 0.0
  %94 = vmatpush1.msra.mxu0 0.0
  %95 = vmatprep.subr.mxu0 0.0
  %96 = vmatpush1.msra.mxu0 0.0
  %97 = vmatprep.subr.mxu0 0.0
  %98 = vmatpush1.msra.mxu0 0.0
  %99 = vmatprep.subr.mxu0 0.0
  %100 = vmatpush1.msra.mxu0 0.0
  %101 = vmatprep.subr.mxu0 0.0
  %102 = vmatpush1.msra.mxu0 0.0
  %103 = vmatprep.subr.mxu0 0.0
  %104 = vmatpush1.msra.mxu0 0.0
  %105 = vmatprep.subr.mxu0 0.0
  %106 = vmatpush1.msra.mxu0 0.0
  %107 = vmatprep.subr.mxu0 0.0
  %108 = vmatpush1.msra.mxu0 0.0
  %109 = vmatprep.mubr.f32.mxu0 0.0
  %110 = vmatmul.mubr.f32.gmra.mrb[0].mxu0 %v14
  %v111 = vpop.f32.mrb[0].mxu0
  %v112 = vadd.f32 %v43, %v111
  %v113 = vpop.f32.mrb[0].mxu0
  %114 = vmatprep.mubr.f32.mxu0 0.0
  %115 = vmatmul.mubr.f32.gmra.mrb[0].mxu0 %v15
  %v116 = vpop.f32.mrb[0].mxu0
  %v117 = vadd.f32 %v43, %v116
  %v118 = vpop.f32.mrb[0].mxu0
  %119 = vmatprep.mubr.f32.mxu0 0.0
  %120 = vmatmul.mubr.f32.gmra.mrb[0].mxu0 %v16
  %v121 = vpop.f32.mrb[0].mxu0
  %v122 = vadd.f32 %v43, %v121
  %v123 = vpop.f32.mrb[0].mxu0
  %124 = vmatprep.mubr.f32.mxu0 0.0
  %125 = vmatmul.mubr.f32.gmra.mrb[0].mxu0 %v17
  %v126 = vpop.f32.mrb[0].mxu0
  %v127 = vadd.f32 %v43, %v126
  %v128 = vpop.f32.mrb[0].mxu0
  %129 = vmatprep.mubr.f32.mxu0 0.0
  %130 = vmatmul.mubr.f32.gmra.mrb[0].mxu0 %v18
  %v131 = vpop.f32.mrb[0].mxu0
  %v132 = vadd.f32 %v43, %v131
  %v133 = vpop.f32.mrb[0].mxu0
  %134 = vmatprep.mubr.f32.mxu0 0.0
  %135 = vmatmul.mubr.f32.gmra.mrb[0].mxu0 %v19
  %v136 = vpop.f32.mrb[0].mxu0
  %v137 = vadd.f32 %v43, %v136
  %v138 = vpop.f32.mrb[0].mxu0
  %139 = vmatprep.mubr.f32.mxu0 0.0
  %140 = vmatmul.mubr.f32.gmra.mrb[0].mxu0 %v20
  %v141 = vpop.f32.mrb[0].mxu0
  %v142 = vadd.f32 %v43, %v141
  %v143 = vpop.f32.mrb[0].mxu0
  %144 = vmatprep.mubr.f32.mxu0 0.0
  %145 = vmatmul.mubr.f32.gmra.mrb[0].mxu0 %v21
  %v146 = vpop.f32.mrb[0].mxu0
  %v147 = vadd.f32 %v43, %v146
  %v148 = vpop.f32.mrb[0].mxu0
  %149 = vdwg.mxu0
  %150 = vmax.xlane.f32.xlu0 %v112
  %v151 = vpop.xlane.xlu0 %150
  %152 = vmax.xlane.f32.xlu0 %v117
  %v153 = vpop.xlane.xlu0 %152
  %154 = vmax.xlane.f32.xlu0 %v122
  %v155 = vpop.xlane.xlu0 %154
  %156 = vmax.xlane.f32.xlu0 %v127
  %v157 = vpop.xlane.xlu0 %156
  %158 = vmax.xlane.f32.xlu0 %v132
  %v159 = vpop.xlane.xlu0 %158
  %160 = vmax.xlane.f32.xlu0 %v137
  %v161 = vpop.xlane.xlu0 %160
  %162 = vmax.xlane.f32.xlu0 %v142
  %v163 = vpop.xlane.xlu0 %162
  %164 = vmax.xlane.f32.xlu0 %v147
  %v165 = vpop.xlane.xlu0 %164
  %v166 = vsub.f32 %v112, %v151
  %v167 = vsub.f32 %v117, %v153
  %v168 = vsub.f32 %v122, %v155
  %v169 = vsub.f32 %v127, %v157
  %v170 = vsub.f32 %v132, %v159
  %v171 = vsub.f32 %v137, %v161
  %v172 = vsub.f32 %v142, %v163
  %v173 = vsub.f32 %v147, %v165
  %v174 = vmul.f32 %v166, 1.442695
  %v175 = vpow.pop %v174
  %v176 = vmul.f32 %v167, 1.442695
  %v177 = vpow.pop %v176
  %v178 = vmul.f32 %v168, 1.442695
  %v179 = vpow.pop %v178
  %v180 = vmul.f32 %v169, 1.442695
  %v181 = vpow.pop %v180
  %v182 = vmul.f32 %v170, 1.442695
  %v183 = vpow.pop %v182
  %v184 = vmul.f32 %v171, 1.442695
  %v185 = vpow.pop %v184
  %v186 = vmul.f32 %v172, 1.442695
  %v187 = vpow.pop %v186
  %v188 = vmul.f32 %v173, 1.442695
  %v189 = vpow.pop %v188
  %190 = vadd.xlane.f32.xlu0 %v175
  %v191 = vpop.xlane.xlu0 %190
  %192 = vadd.xlane.f32.xlu0 %v177
  %v193 = vpop.xlane.xlu0 %192
  %194 = vadd.xlane.f32.xlu0 %v179
  %v195 = vpop.xlane.xlu0 %194
  %196 = vadd.xlane.f32.xlu0 %v181
  %v197 = vpop.xlane.xlu0 %196
  %198 = vadd.xlane.f32.xlu0 %v183
  %v199 = vpop.xlane.xlu0 %198
  %200 = vadd.xlane.f32.xlu0 %v185
  %v201 = vpop.xlane.xlu0 %200
  %202 = vadd.xlane.f32.xlu0 %v187
  %v203 = vpop.xlane.xlu0 %202
  %204 = vadd.xlane.f32.xlu0 %v189
  %v205 = vpop.xlane.xlu0 %204
  %v206 = vlog2.pop %v191
  %v207 = vmul.f32 %v206, 0.6931472
  %v208 = vlog2.pop %v193
  %v209 = vmul.f32 %v208, 0.6931472
  %v210 = vlog2.pop %v195
  %v211 = vmul.f32 %v210, 0.6931472
  %v212 = vlog2.pop %v197
  %v213 = vmul.f32 %v212, 0.6931472
  %v214 = vlog2.pop %v199
  %v215 = vmul.f32 %v214, 0.6931472
  %v216 = vlog2.pop %v201
  %v217 = vmul.f32 %v216, 0.6931472
  %v218 = vlog2.pop %v203
  %v219 = vmul.f32 %v218, 0.6931472
  %v220 = vlog2.pop %v205
  %v221 = vmul.f32 %v220, 0.6931472
  %v222 = vadd.f32 %v207, %v151
  %v223 = vadd.f32 %v209, %v153
  %v224 = vadd.f32 %v211, %v155
  %v225 = vadd.f32 %v213, %v157
  %v226 = vadd.f32 %v215, %v159
  %v227 = vadd.f32 %v217, %v161
  %v228 = vadd.f32 %v219, %v163
  %v229 = vadd.f32 %v221, %v165
  %v230 = vsub.f32 %v112, %v222
  %v231 = vsub.f32 %v117, %v223
  %v232 = vsub.f32 %v122, %v224
  %v233 = vsub.f32 %v127, %v225
  %v234 = vsub.f32 %v132, %v226
  %v235 = vsub.f32 %v137, %v227
  %v236 = vsub.f32 %v142, %v228
  %v237 = vsub.f32 %v147, %v229
  %238 = vst [vmem:[%s3] sm:$0xff] %v230
  %239 = vst [vmem:[%s3 + $0x8] sm:$0xff] %v231
  %240 = vst [vmem:[%s3 + $0x10] sm:$0xff] %v232
  %241 = vst [vmem:[%s3 + $0x18] sm:$0xff] %v233
  %242 = vst [vmem:[%s3 + $0x20] sm:$0xff] %v234
  %243 = vst [vmem:[%s3 + $0x28] sm:$0xff] %v235
  %244 = vst [vmem:[%s3 + $0x30] sm:$0xff] %v236
  %245 = vst [vmem:[%s3 + $0x38] sm:$0xff] %v237
  // Predicated region
  $region14: #{seq2seq_forward.5} parent=0 // pred_check
    _
  $region15: #{seq2seq_forward.5} parent=0 // pred_check_branch
    %247 = sbr.rel (0) target = $region17
  $region16: #{seq2seq_forward.5} parent=0 // pred_region
    _
  $region17: #{seq2seq_forward.5} parent=0 // pred_fallthru
    _
  // Predicated region
  $region18: #{seq2seq_forward.5} parent=0 // pred_check
    _
  $region19: #{seq2seq_forward.5} parent=0 // pred_check_branch
    %249 = sbr.rel (0) target = $region21
  $region20: #{seq2seq_forward.5} parent=0 // pred_region
    _
  $region21: #{seq2seq_forward.5} parent=0 // pred_fallthru
    _

// kernel: seq2seq_forward.3
$region0: #{seq2seq_forward.3}
  #allocation0 [shape = 'u32[]', space=smem, size = 0x4, offset = 0x4, fixed_abs, tag = 'smem constant byte address 0x4 - core index']
  #allocation1 [shape = 'u32[144,128]{1,0:T(1,128)}', space=vmem, size = 0x12000, scoped, tag = 'internal scratch']
  #allocation2 [shape = 'f32[64,384]{1,0:T(8,128)}', space=vmem, size = 0x18000, scoped, tag = 'scratch operand']
  %s0 = inlined_call_operand.vmem [shape: f32[64,32], index: 0, kind: input, shape index: {}]
  %s1 = inlined_call_operand.vmem [shape: f32[8,128], index: 1, kind: input, shape index: {}]
  %s2 = inlined_call_operand.vmem [shape: f32[32,384], index: 2, kind: input, shape index: {}]
  %s3 = inlined_call_operand.vmem [shape: f32[128,384], index: 3, kind: input, shape index: {}]
  %s4 = inlined_call_operand.vmem [shape: f32[1,384], index: 4, kind: input, shape index: {}]
  %s5 = inlined_call_operand.vmem [shape: f32[1,384], index: 5, kind: input, shape index: {}]
  %s6 = inlined_call_operand.vmem [shape: f32[64,128], index: 6, kind: output, shape index: {0}]
  %s7 = inlined_call_operand.vmem [shape: f32[8,128], index: 7, kind: output, shape index: {1}]
  %8 = xla_tuple %s6, %s7
  %s9 = sld [smem:[#allocation0]]
  $region42: #{seq2seq_forward.3} parent=0
    _
  %s11 = ssub.s32 1, %s9
  %s12 = scalar_select 0, %s11, %s9
  // Predicated region
  $region2: #{seq2seq_forward.3} parent=0 // pred_check
    _
  $region3: #{seq2seq_forward.3} parent=0 // pred_check_branch
    %14 = sbr.rel (0) target = $region5
  $region4: #{seq2seq_forward.3} parent=0 // pred_region
    _
  $region5: #{seq2seq_forward.3} parent=0 // pred_fallthru
    _
  // Predicated region
  $region6: #{seq2seq_forward.3} parent=0 // pred_check
    _
  $region7: #{seq2seq_forward.3} parent=0 // pred_check_branch
    %16 = sbr.rel (0) target = $region9
  $region8: #{seq2seq_forward.3} parent=0 // pred_region
    _
  $region9: #{seq2seq_forward.3} parent=0 // pred_fallthru
    _
  // Predicated region
  $region10: #{seq2seq_forward.3} parent=0 // pred_check
    _
  $region11: #{seq2seq_forward.3} parent=0 // pred_check_branch
    %18 = sbr.rel (0) target = $region13
  $region12: #{seq2seq_forward.3} parent=0 // pred_region
    _
  $region13: #{seq2seq_forward.3} parent=0 // pred_fallthru
    _
  // Predicated region
  $region14: #{seq2seq_forward.3} parent=0 // pred_check
    _
  $region15: #{seq2seq_forward.3} parent=0 // pred_check_branch
    %20 = sbr.rel (0) target = $region17
  $region16: #{seq2seq_forward.3} parent=0 // pred_region
    _
  $region17: #{seq2seq_forward.3} parent=0 // pred_fallthru
    _
  // Predicated region
  $region18: #{seq2seq_forward.3} parent=0 // pred_check
    _
  $region19: #{seq2seq_forward.3} parent=0 // pred_check_branch
    %22 = sbr.rel (0) target = $region21
  $region20: #{seq2seq_forward.3} parent=0 // pred_region
    _
  $region21: #{seq2seq_forward.3} parent=0 // pred_fallthru
    _
  // Predicated region
  $region22: #{seq2seq_forward.3} parent=0 // pred_check
    _
  $region23: #{seq2seq_forward.3} parent=0 // pred_check_branch
    %24 = sbr.rel (0) target = $region25
  $region24: #{seq2seq_forward.3} parent=0 // pred_region
    _
  $region25: #{seq2seq_forward.3} parent=0 // pred_fallthru
    _
  %v25 = vld [vmem:[%s0] sm:$0xff]
  %v26 = vld [vmem:[%s0 + $0x8] sm:$0xff]
  %v27 = vld [vmem:[%s0 + $0x10] sm:$0xff]
  %v28 = vld [vmem:[%s0 + $0x18] sm:$0xff]
  %v29 = vld [vmem:[%s0 + $0x20] sm:$0xff]
  %v30 = vld [vmem:[%s0 + $0x28] sm:$0xff]
  %v31 = vld [vmem:[%s0 + $0x30] sm:$0xff]
  %v32 = vld [vmem:[%s0 + $0x38] sm:$0xff]
  %v33 = vld [vmem:[%s2] sm:$0xff]
  %v34 = vld [vmem:[%s2 + $0x8] sm:$0xff]
  %v35 = vld [vmem:[%s2 + $0x10] sm:$0xff]
  %v36 = vld [vmem:[%s2 + $0x18] sm:$0xff]
  %v37 = vld [vmem:[%s2 + $0x20] sm:$0xff]
  %v38 = vld [vmem:[%s2 + $0x28] sm:$0xff]
  %v39 = vld [vmem:[%s2 + $0x30] sm:$0xff]
  %v40 = vld [vmem:[%s2 + $0x38] sm:$0xff]
  %v41 = vld [vmem:[%s2 + $0x40] sm:$0xff]
  %v42 = vld [vmem:[%s2 + $0x48] sm:$0xff]
  %v43 = vld [vmem:[%s2 + $0x50] sm:$0xff]
  %v44 = vld [vmem:[%s2 + $0x58] sm:$0xff]
  %v45 = vld [vmem:[%s4] sm:$0x7]
  %v47 = vlaneseq
  %v48 = vshrl.u32 %v47, 7
  %v49 = vsub.s32 0, %v48
  %v50 = vrot.slane %v45, %v49
  %v51 = vlaneseq
  %v52 = vshrl.u32 %v51, 7
  %v53 = vsub.s32 1, %v52
  %v54 = vrot.slane %v45, %v53
  %v55 = vlaneseq
  %v56 = vshrl.u32 %v55, 7
  %v57 = vsub.s32 2, %v56
  %v58 = vrot.slane %v45, %v57
  %vm62 = vcmask 261120
  %v64 = vsel %vm62, %v25, 0
  %v67 = vsel %vm62, %v26, 0
  %v70 = vsel %vm62, %v27, 0
  %v73 = vsel %vm62, %v28, 0
  %v76 = vsel %vm62, %v29, 0
  %v79 = vsel %vm62, %v30, 0
  %v82 = vsel %vm62, %v31, 0
  %v85 = vsel %vm62, %v32, 0
  %87 = vmatprep.subr.mxu0 %v34
  %88 = vmatpush1.msra.mxu0 %v33
  %89 = vmatprep.subr.mxu0 %v37
  %90 = vmatpush1.msra.mxu0 %v36
  %91 = vmatprep.subr.mxu0 %v40
  %92 = vmatpush1.msra.mxu0 %v39
  %93 = vmatprep.subr.mxu0 %v43
  %94 = vmatpush1.msra.mxu0 %v42
  %95 = vmatprep.subr.mxu0 0.0
  %96 = vmatpush1.msra.mxu0 0.0
  %97 = vmatprep.subr.mxu0 0.0
  %98 = vmatpush1.msra.mxu0 0.0
  %99 = vmatprep.subr.mxu0 0.0
  %100 = vmatpush1.msra.mxu0 0.0
  %101 = vmatprep.subr.mxu0 0.0
  %102 = vmatpush1.msra.mxu0 0.0
  %103 = vmatprep.subr.mxu0 0.0
  %104 = vmatpush1.msra.mxu0 0.0
  %105 = vmatprep.subr.mxu0 0.0
  %106 = vmatpush1.msra.mxu0 0.0
  %107 = vmatprep.subr.mxu0 0.0
  %108 = vmatpush1.msra.mxu0 0.0
  %109 = vmatprep.subr.mxu0 0.0
  %110 = vmatpush1.msra.mxu0 0.0
  %111 = vmatprep.subr.mxu0 0.0
  %112 = vmatpush1.msra.mxu0 0.0
  %113 = vmatprep.subr.mxu0 0.0
  %114 = vmatpush1.msra.mxu0 0.0
  %115 = vmatprep.subr.mxu0 0.0
  %116 = vmatpush1.msra.mxu0 0.0
  %117 = vmatprep.subr.mxu0 0.0
  %118 = vmatpush1.msra.mxu0 0.0
  %119 = vmatprep.subr.mxu0 0.0
  %120 = vmatpush1.msra.mxu0 0.0
  %121 = vmatprep.subr.mxu0 0.0
  %122 = vmatpush1.msra.mxu0 0.0
  %123 = vmatprep.subr.mxu0 0.0
  %124 = vmatpush1.msra.mxu0 0.0
  %125 = vmatprep.subr.mxu0 0.0
  %126 = vmatpush1.msra.mxu0 0.0
  %127 = vmatprep.subr.mxu0 0.0
  %128 = vmatpush1.msra.mxu0 0.0
  %129 = vmatprep.subr.mxu0 0.0
  %130 = vmatpush1.msra.mxu0 0.0
  %131 = vmatprep.subr.mxu0 0.0
  %132 = vmatpush1.msra.mxu0 0.0
  %133 = vmatprep.subr.mxu0 0.0
  %134 = vmatpush1.msra.mxu0 0.0
  %135 = vmatprep.subr.mxu0 0.0
  %136 = vmatpush1.msra.mxu0 0.0
  %137 = vmatprep.subr.mxu0 0.0
  %138 = vmatpush1.msra.mxu0 0.0
  %139 = vmatprep.subr.mxu0 0.0
  %140 = vmatpush1.msra.mxu0 0.0
  %141 = vmatprep.subr.mxu0 0.0
  %142 = vmatpush1.msra.mxu0 0.0
  %143 = vmatprep.subr.mxu0 0.0
  %144 = vmatpush1.msra.mxu0 0.0
  %145 = vmatprep.subr.mxu0 0.0
  %146 = vmatpush1.msra.mxu0 0.0
  %147 = vmatprep.subr.mxu0 0.0
  %148 = vmatpush1.msra.mxu0 0.0
  %149 = vmatprep.subr.mxu0 0.0
  %150 = vmatpush1.msra.mxu0 0.0
  %151 = vmatprep.mubr.f32.mxu0 0.0
  %152 = vmatmul.mubr.f32.gmra.mrb[0].mxu0 %v64
  %v153 = vpop.f32.mrb[0].mxu0
  %v154 = vadd.f32 %v50, %v153
  %v155 = vpop.f32.mrb[0].mxu0
  %v156 = vadd.f32 %v54, %v155
  %157 = vmatprep.mubr.f32.mxu0 0.0
  %158 = vmatmul.mubr.f32.gmra.mrb[0].mxu0 %v67
  %v159 = vpop.f32.mrb[0].mxu0
  %v160 = vadd.f32 %v50, %v159
  %v161 = vpop.f32.mrb[0].mxu0
  %v162 = vadd.f32 %v54, %v161
  %163 = vmatprep.mubr.f32.mxu0 0.0
  %164 = vmatmul.mubr.f32.gmra.mrb[0].mxu0 %v70
  %v165 = vpop.f32.mrb[0].mxu0
  %v166 = vadd.f32 %v50, %v165
  %v167 = vpop.f32.mrb[0].mxu0
  %v168 = vadd.f32 %v54, %v167
  %169 = vmatprep.mubr.f32.mxu0 0.0
  %170 = vmatmul.mubr.f32.gmra.mrb[0].mxu0 %v73
  %v171 = vpop.f32.mrb[0].mxu0
  %v172 = vadd.f32 %v50, %v171
  %v173 = vpop.f32.mrb[0].mxu0
  %v174 = vadd.f32 %v54, %v173
  %175 = vmatprep.mubr.f32.mxu0 0.0
  %176 = vmatmul.mubr.f32.gmra.mrb[0].mxu0 %v76
  %v177 = vpop.f32.mrb[0].mxu0
  %v178 = vadd.f32 %v50, %v177
  %v179 = vpop.f32.mrb[0].mxu0
  %v180 = vadd.f32 %v54, %v179
  %181 = vmatprep.mubr.f32.mxu0 0.0
  %182 = vmatmul.mubr.f32.gmra.mrb[0].mxu0 %v79
  %v183 = vpop.f32.mrb[0].mxu0
  %v184 = vadd.f32 %v50, %v183
  %v185 = vpop.f32.mrb[0].mxu0
  %v186 = vadd.f32 %v54, %v185
  %187 = vmatprep.mubr.f32.mxu0 0.0
  %188 = vmatmul.mubr.f32.gmra.mrb[0].mxu0 %v82
  %v189 = vpop.f32.mrb[0].mxu0
  %v190 = vadd.f32 %v50, %v189
  %v191 = vpop.f32.mrb[0].mxu0
  %v192 = vadd.f32 %v54, %v191
  %193 = vmatprep.mubr.f32.mxu0 0.0
  %194 = vmatmul.mubr.f32.gmra.mrb[0].mxu0 %v85
  %v195 = vpop.f32.mrb[0].mxu0
  %v196 = vadd.f32 %v50, %v195
  %v197 = vpop.f32.mrb[0].mxu0
  %v198 = vadd.f32 %v54, %v197
  %199 = vdwg.mxu0
  %200 = vmatprep.subr.mxu0 0.0
  %201 = vmatpush1.msra.mxu0 %v35
  %202 = vmatprep.subr.mxu0 0.0
  %203 = vmatpush1.msra.mxu0 %v38
  %204 = vmatprep.subr.mxu0 0.0
  %205 = vmatpush1.msra.mxu0 %v41
  %206 = vmatprep.subr.mxu0 0.0
  %207 = vmatpush1.msra.mxu0 %v44
  %208 = vmatprep.subr.mxu0 0.0
  %209 = vmatpush1.msra.mxu0 0.0
  %210 = vmatprep.subr.mxu0 0.0
  %211 = vmatpush1.msra.mxu0 0.0
  %212 = vmatprep.subr.mxu0 0.0
  %213 = vmatpush1.msra.mxu0 0.0
  %214 = vmatprep.subr.mxu0 0.0
  %215 = vmatpush1.msra.mxu0 0.0
  %216 = vmatprep.subr.mxu0 0.0
  %217 = vmatpush1.msra.mxu0 0.0
  %218 = vmatprep.subr.mxu0 0.0
  %219 = vmatpush1.msra.mxu0 0.0
  %220 = vmatprep.subr.mxu0 0.0
  %221 = vmatpush1.msra.mxu0 0.0
  %222 = vmatprep.subr.mxu0 0.0
  %223 = vmatpush1.msra.mxu0 0.0
  %224 = vmatprep.subr.mxu0 0.0
  %225 = vmatpush1.msra.mxu0 0.0
  %226 = vmatprep.subr.mxu0 0.0
  %227 = vmatpush1.msra.mxu0 0.0
  %228 = vmatprep.subr.mxu0 0.0
  %229 = vmatpush1.msra.mxu0 0.0
  %230 = vmatprep.subr.mxu0 0.0
  %231 = vmatpush1.msra.mxu0 0.0
  %232 = vmatprep.subr.mxu0 0.0
  %233 = vmatpush1.msra.mxu0 0.0
  %234 = vmatprep.subr.mxu0 0.0
  %235 = vmatpush1.msra.mxu0 0.0
  %236 = vmatprep.subr.mxu0 0.0
  %237 = vmatpush1.msra.mxu0 0.0
  %238 = vmatprep.subr.mxu0 0.0
  %239 = vmatpush1.msra.mxu0 0.0
  %240 = vmatprep.subr.mxu0 0.0
  %241 = vmatpush1.msra.mxu0 0.0
  %242 = vmatprep.subr.mxu0 0.0
  %243 = vmatpush1.msra.mxu0 0.0
  %244 = vmatprep.subr.mxu0 0.0
  %245 = vmatpush1.msra.mxu0 0.0
  %246 = vmatprep.subr.mxu0 0.0
  %247 = vmatpush1.msra.mxu0 0.0
  %248 = vmatprep.subr.mxu0 0.0
  %249 = vmatpush1.msra.mxu0 0.0
  %250 = vmatprep.subr.mxu0 0.0
  %251 = vmatpush1.msra.mxu0 0.0
  %252 = vmatprep.subr.mxu0 0.0
  %253 = vmatpush1.msra.mxu0 0.0
  %254 = vmatprep.subr.mxu0 0.0
  %255 = vmatpush1.msra.mxu0 0.0
  %256 = vmatprep.subr.mxu0 0.0
  %257 = vmatpush1.msra.mxu0 0.0
  %258 = vmatprep.subr.mxu0 0.0
  %259 = vmatpush1.msra.mxu0 0.0
  %260 = vmatprep.subr.mxu0 0.0
  %261 = vmatpush1.msra.mxu0 0.0
  %262 = vmatprep.subr.mxu0 0.0
  %263 = vmatpush1.msra.mxu0 0.0
  %264 = vmatprep.mubr.f32.mxu0 0.0
  %265 = vmatmul.mubr.f32.gmra.mrb[0].mxu0 %v64
  %v266 = vpop.f32.mrb[0].mxu0
  %v267 = vadd.f32 %v58, %v266
  %v268 = vpop.f32.mrb[0].mxu0
  %269 = vmatprep.mubr.f32.mxu0 0.0
  %270 = vmatmul.mubr.f32.gmra.mrb[0].mxu0 %v67
  %v271 = vpop.f32.mrb[0].mxu0
  %v272 = vadd.f32 %v58, %v271
  %v273 = vpop.f32.mrb[0].mxu0
  %274 = vmatprep.mubr.f32.mxu0 0.0
  %275 = vmatmul.mubr.f32.gmra.mrb[0].mxu0 %v70
  %v276 = vpop.f32.mrb[0].mxu0
  %v277 = vadd.f32 %v58, %v276
  %v278 = vpop.f32.mrb[0].mxu0
  %279 = vmatprep.mubr.f32.mxu0 0.0
  %280 = vmatmul.mubr.f32.gmra.mrb[0].mxu0 %v73
  %v281 = vpop.f32.mrb[0].mxu0
  %v282 = vadd.f32 %v58, %v281
  %v283 = vpop.f32.mrb[0].mxu0
  %284 = vmatprep.mubr.f32.mxu0 0.0
  %285 = vmatmul.mubr.f32.gmra.mrb[0].mxu0 %v76
  %v286 = vpop.f32.mrb[0].mxu0
  %v287 = vadd.f32 %v58, %v286
  %v288 = vpop.f32.mrb[0].mxu0
  %289 = vmatprep.mubr.f32.mxu0 0.0
  %290 = vmatmul.mubr.f32.gmra.mrb[0].mxu0 %v79
  %v291 = vpop.f32.mrb[0].mxu0
  %v292 = vadd.f32 %v58, %v291
  %v293 = vpop.f32.mrb[0].mxu0
  %294 = vmatprep.mubr.f32.mxu0 0.0
  %295 = vmatmul.mubr.f32.gmra.mrb[0].mxu0 %v82
  %v296 = vpop.f32.mrb[0].mxu0
  %v297 = vadd.f32 %v58, %v296
  %v298 = vpop.f32.mrb[0].mxu0
  %299 = vmatprep.mubr.f32.mxu0 0.0
  %300 = vmatmul.mubr.f32.gmra.mrb[0].mxu0 %v85
  %v301 = vpop.f32.mrb[0].mxu0
  %v302 = vadd.f32 %v58, %v301
  %v303 = vpop.f32.mrb[0].mxu0
  %304 = vdwg.mxu0
  %305 = vst [vmem:[#allocation2] sm:$0xff] %v154
  %306 = vst [vmem:[#allocation2 + $0x8] sm:$0xff] %v156
  %307 = vst [vmem:[#allocation2 + $0x10] sm:$0xff] %v267
  %308 = vst [vmem:[#allocation2 + $0x18] sm:$0xff] %v160
  %309 = vst [vmem:[#allocation2 + $0x20] sm:$0xff] %v162
  %310 = vst [vmem:[#allocation2 + $0x28] sm:$0xff] %v272
  %311 = vst [vmem:[#allocation2 + $0x30] sm:$0xff] %v166
  %312 = vst [vmem:[#allocation2 + $0x38] sm:$0xff] %v168
  %313 = vst [vmem:[#allocation2 + $0x40] sm:$0xff] %v277
  %314 = vst [vmem:[#allocation2 + $0x48] sm:$0xff] %v172
  %315 = vst [vmem:[#allocation2 + $0x50] sm:$0xff] %v174
  %316 = vst [vmem:[#allocation2 + $0x58] sm:$0xff] %v282
  %317 = vst [vmem:[#allocation2 + $0x60] sm:$0xff] %v178
  %318 = vst [vmem:[#allocation2 + $0x68] sm:$0xff] %v180
  %319 = vst [vmem:[#allocation2 + $0x70] sm:$0xff] %v287
  %320 = vst [vmem:[#allocation2 + $0x78] sm:$0xff] %v184
  %321 = vst [vmem:[#allocation2 + $0x80] sm:$0xff] %v186
  %322 = vst [vmem:[#allocation2 + $0x88] sm:$0xff] %v292
  %323 = vst [vmem:[#allocation2 + $0x90] sm:$0xff] %v190
  %324 = vst [vmem:[#allocation2 + $0x98] sm:$0xff] %v192
  %325 = vst [vmem:[#allocation2 + $0xa0] sm:$0xff] %v297
  %326 = vst [vmem:[#allocation2 + $0xa8] sm:$0xff] %v196
  %327 = vst [vmem:[#allocation2 + $0xb0] sm:$0xff] %v198
  %328 = vst [vmem:[#allocation2 + $0xb8] sm:$0xff] %v302
  %v329 = vld [vmem:[%s3] sm:$0xff]
  %v330 = vld [vmem:[%s3 + $0x8] sm:$0xff]
  %v331 = vld [vmem:[%s3 + $0x10] sm:$0xff]
  %v332 = vld [vmem:[%s3 + $0x18] sm:$0xff]
  %v333 = vld [vmem:[%s3 + $0x20] sm:$0xff]
  %v334 = vld [vmem:[%s3 + $0x28] sm:$0xff]
  %v335 = vld [vmem:[%s3 + $0x30] sm:$0xff]
  %v336 = vld [vmem:[%s3 + $0x38] sm:$0xff]
  %v337 = vld [vmem:[%s3 + $0x40] sm:$0xff]
  %v338 = vld [vmem:[%s3 + $0x48] sm:$0xff]
  %v339 = vld [vmem:[%s3 + $0x50] sm:$0xff]
  %v340 = vld [vmem:[%s3 + $0x58] sm:$0xff]
  %v341 = vld [vmem:[%s3 + $0x60] sm:$0xff]
  %v342 = vld [vmem:[%s3 + $0x68] sm:$0xff]
  %v343 = vld [vmem:[%s3 + $0x70] sm:$0xff]
  %v344 = vld [vmem:[%s3 + $0x78] sm:$0xff]
  %v345 = vld [vmem:[%s3 + $0x80] sm:$0xff]
  %v346 = vld [vmem:[%s3 + $0x88] sm:$0xff]
  %v347 = vld [vmem:[%s3 + $0x90] sm:$0xff]
  %v348 = vld [vmem:[%s3 + $0x98] sm:$0xff]
  %v349 = vld [vmem:[%s3 + $0xa0] sm:$0xff]
  %v350 = vld [vmem:[%s3 + $0xa8] sm:$0xff]
  %v351 = vld [vmem:[%s3 + $0xb0] sm:$0xff]
  %v352 = vld [vmem:[%s3 + $0xb8] sm:$0xff]
  %v353 = vld [vmem:[%s3 + $0xc0] sm:$0xff]
  %v354 = vld [vmem:[%s3 + $0xc8] sm:$0xff]
  %v355 = vld [vmem:[%s3 + $0xd0] sm:$0xff]
  %v356 = vld [vmem:[%s3 + $0xd8] sm:$0xff]
  %v357 = vld [vmem:[%s3 + $0xe0] sm:$0xff]
  %v358 = vld [vmem:[%s3 + $0xe8] sm:$0xff]
  %v359 = vld [vmem:[%s3 + $0xf0] sm:$0xff]
  %v360 = vld [vmem:[%s3 + $0xf8] sm:$0xff]
  %v361 = vld [vmem:[%s3 + $0x100] sm:$0xff]
  %v362 = vld [vmem:[%s3 + $0x108] sm:$0xff]
  %v363 = vld [vmem:[%s3 + $0x110] sm:$0xff]
  %v364 = vld [vmem:[%s3 + $0x118] sm:$0xff]
  %v365 = vld [vmem:[%s3 + $0x120] sm:$0xff]
  %v366 = vld [vmem:[%s3 + $0x128] sm:$0xff]
  %v367 = vld [vmem:[%s3 + $0x130] sm:$0xff]
  %v368 = vld [vmem:[%s3 + $0x138] sm:$0xff]
  %v369 = vld [vmem:[%s3 + $0x140] sm:$0xff]
  %v370 = vld [vmem:[%s3 + $0x148] sm:$0xff]
  %v371 = vld [vmem:[%s3 + $0x150] sm:$0xff]
  %v372 = vld [vmem:[%s3 + $0x158] sm:$0xff]
  %v373 = vld [vmem:[%s3 + $0x160] sm:$0xff]
  %v374 = vld [vmem:[%s3 + $0x168] sm:$0xff]
  %v375 = vld [vmem:[%s3 + $0x170] sm:$0xff]
  %v376 = vld [vmem:[%s3 + $0x178] sm:$0xff]
  %v377 = vld [vmem:[%s5] sm:$0x7]
  %v378 = vld [vmem:[%s1] sm:$0xff]
  %s379 = smul.u32 0, 3
  %s380 = smul.addr %s379, 8
  %s381 = scalar_lea.vmem [#allocation2], %s380
  %v382 = vld [vmem:[%s381] sm:$0xff]
  %v383 = vld [vmem:[%s381 + $0x8] sm:$0xff]
  %v384 = vld [vmem:[%s381 + $0x10] sm:$0xff]
  %v386 = vlaneseq
  %v387 = vshrl.u32 %v386, 7
  %v388 = vsub.s32 0, %v387
  %v389 = vrot.slane %v377, %v388
  %v390 = vlaneseq
  %v391 = vshrl.u32 %v390, 7
  %v392 = vsub.s32 1, %v391
  %v393 = vrot.slane %v377, %v392
  %v394 = vlaneseq
  %v395 = vshrl.u32 %v394, 7
  %v396 = vsub.s32 2, %v395
  %v397 = vrot.slane %v377, %v396
  %401 = vmatprep.subr.mxu0 %v330
  %402 = vmatpush1.msra.mxu0 %v329
  %403 = vmatprep.subr.mxu0 %v333
  %404 = vmatpush1.msra.mxu0 %v332
  %405 = vmatprep.subr.mxu0 %v336
  %406 = vmatpush1.msra.mxu0 %v335
  %407 = vmatprep.subr.mxu0 %v339
  %408 = vmatpush1.msra.mxu0 %v338
  %409 = vmatprep.subr.mxu0 %v342
  %410 = vmatpush1.msra.mxu0 %v341
  %411 = vmatprep.subr.mxu0 %v345
  %412 = vmatpush1.msra.mxu0 %v344
  %413 = vmatprep.subr.mxu0 %v348
  %414 = vmatpush1.msra.mxu0 %v347
  %415 = vmatprep.subr.mxu0 %v351
  %416 = vmatpush1.msra.mxu0 %v350
  %417 = vmatprep.subr.mxu0 %v354
  %418 = vmatpush1.msra.mxu0 %v353
  %419 = vmatprep.subr.mxu0 %v357
  %420 = vmatpush1.msra.mxu0 %v356
  %421 = vmatprep.subr.mxu0 %v360
  %422 = vmatpush1.msra.mxu0 %v359
  %423 = vmatprep.subr.mxu0 %v363
  %424 = vmatpush1.msra.mxu0 %v362
  %425 = vmatprep.subr.mxu0 %v366
  %426 = vmatpush1.msra.mxu0 %v365
  %427 = vmatprep.subr.mxu0 %v369
  %428 = vmatpush1.msra.mxu0 %v368
  %429 = vmatprep.subr.mxu0 %v372
  %430 = vmatpush1.msra.mxu0 %v371
  %431 = vmatprep.subr.mxu0 %v375
  %432 = vmatpush1.msra.mxu0 %v374
  %433 = vmatprep.subr.mxu0 0.0
  %434 = vmatpush1.msra.mxu0 0.0
  %435 = vmatprep.subr.mxu0 0.0
  %436 = vmatpush1.msra.mxu0 0.0
  %437 = vmatprep.subr.mxu0 0.0
  %438 = vmatpush1.msra.mxu0 0.0
  %439 = vmatprep.subr.mxu0 0.0
  %440 = vmatpush1.msra.mxu0 0.0
  %441 = vmatprep.subr.mxu0 0.0
  %442 = vmatpush1.msra.mxu0 0.0
  %443 = vmatprep.subr.mxu0 0.0
  %444 = vmatpush1.msra.mxu0 0.0
  %445 = vmatprep.subr.mxu0 0.0
  %446 = vmatpush1.msra.mxu0 0.0
  %447 = vmatprep.subr.mxu0 0.0
  %448 = vmatpush1.msra.mxu0 0.0
  %449 = vmatprep.subr.mxu0 0.0
  %450 = vmatpush1.msra.mxu0 0.0
  %451 = vmatprep.subr.mxu0 0.0
  %452 = vmatpush1.msra.mxu0 0.0
  %453 = vmatprep.subr.mxu0 0.0
  %454 = vmatpush1.msra.mxu0 0.0
  %455 = vmatprep.subr.mxu0 0.0
  %456 = vmatpush1.msra.mxu0 0.0
  %457 = vmatprep.subr.mxu0 0.0
  %458 = vmatpush1.msra.mxu0 0.0
  %459 = vmatprep.subr.mxu0 0.0
  %460 = vmatpush1.msra.mxu0 0.0
  %461 = vmatprep.subr.mxu0 0.0
  %462 = vmatpush1.msra.mxu0 0.0
  %463 = vmatprep.subr.mxu0 0.0
  %464 = vmatpush1.msra.mxu0 0.0
  %465 = vmatprep.mubr.f32.mxu0 0.0
  %466 = vmatmul.mubr.f32.gmra.mrb[0].mxu0 %v378
  %v467 = vpop.f32.mrb[0].mxu0
  %v468 = vadd.f32 %v389, %v467
  %v469 = vpop.f32.mrb[0].mxu0
  %v470 = vadd.f32 %v393, %v469
  %471 = vdwg.mxu0
  %472 = vmatprep.subr.mxu0 0.0
  %473 = vmatpush1.msra.mxu0 %v331
  %474 = vmatprep.subr.mxu0 0.0
  %475 = vmatpush1.msra.mxu0 %v334
  %476 = vmatprep.subr.mxu0 0.0
  %477 = vmatpush1.msra.mxu0 %v337
  %478 = vmatprep.subr.mxu0 0.0
  %479 = vmatpush1.msra.mxu0 %v340
  %480 = vmatprep.subr.mxu0 0.0
  %481 = vmatpush1.msra.mxu0 %v343
  %482 = vmatprep.subr.mxu0 0.0
  %483 = vmatpush1.msra.mxu0 %v346
  %484 = vmatprep.subr.mxu0 0.0
  %485 = vmatpush1.msra.mxu0 %v349
  %486 = vmatprep.subr.mxu0 0.0
  %487 = vmatpush1.msra.mxu0 %v352
  %488 = vmatprep.subr.mxu0 0.0
  %489 = vmatpush1.msra.mxu0 %v355
  %490 = vmatprep.subr.mxu0 0.0
  %491 = vmatpush1.msra.mxu0 %v358
  %492 = vmatprep.subr.mxu0 0.0
  %493 = vmatpush1.msra.mxu0 %v361
  %494 = vmatprep.subr.mxu0 0.0
  %495 = vmatpush1.msra.mxu0 %v364
  %496 = vmatprep.subr.mxu0 0.0
  %497 = vmatpush1.msra.mxu0 %v367
  %498 = vmatprep.subr.mxu0 0.0
  %499 = vmatpush1.msra.mxu0 %v370
  %500 = vmatprep.subr.mxu0 0.0
  %501 = vmatpush1.msra.mxu0 %v373
  %502 = vmatprep.subr.mxu0 0.0
  %503 = vmatpush1.msra.mxu0 %v376
  %504 = vmatprep.subr.mxu0 0.0
  %505 = vmatpush1.msra.mxu0 0.0
  %506 = vmatprep.subr.mxu0 0.0
  %507 = vmatpush1.msra.mxu0 0.0
  %508 = vmatprep.subr.mxu0 0.0
  %509 = vmatpush1.msra.mxu0 0.0
  %510 = vmatprep.subr.mxu0 0.0
  %511 = vmatpush1.msra.mxu0 0.0
  %512 = vmatprep.subr.mxu0 0.0
  %513 = vmatpush1.msra.mxu0 0.0
  %514 = vmatprep.subr.mxu0 0.0
  %515 = vmatpush1.msra.mxu0 0.0
  %516 = vmatprep.subr.mxu0 0.0
  %517 = vmatpush1.msra.mxu0 0.0
  %518 = vmatprep.subr.mxu0 0.0
  %519 = vmatpush1.msra.mxu0 0.0
  %520 = vmatprep.subr.mxu0 0.0
  %521 = vmatpush1.msra.mxu0 0.0
  %522 = vmatprep.subr.mxu0 0.0
  %523 = vmatpush1.msra.mxu0 0.0
  %524 = vmatprep.subr.mxu0 0.0
  %525 = vmatpush1.msra.mxu0 0.0
  %526 = vmatprep.subr.mxu0 0.0
  %527 = vmatpush1.msra.mxu0 0.0
  %528 = vmatprep.subr.mxu0 0.0
  %529 = vmatpush1.msra.mxu0 0.0
  %530 = vmatprep.subr.mxu0 0.0
  %531 = vmatpush1.msra.mxu0 0.0
  %532 = vmatprep.subr.mxu0 0.0
  %533 = vmatpush1.msra.mxu0 0.0
  %534 = vmatprep.subr.mxu0 0.0
  %535 = vmatpush1.msra.mxu0 0.0
  %536 = vmatprep.mubr.f32.mxu0 0.0
  %537 = vmatmul.mubr.f32.gmra.mrb[0].mxu0 %v378
  %v538 = vpop.f32.mrb[0].mxu0
  %v539 = vadd.f32 %v397, %v538
  %v540 = vpop.f32.mrb[0].mxu0
  %541 = vdwg.mxu0
  %v542 = vadd.f32 %v382, %v468
  %v543 = vxor.u32 %v542, 2147483648
  %v544 = vmul.f32 %v543, 1.442695
  %v545 = vpow.pop %v544
  %v546 = vadd.f32 %v545, 1.0
  %v547 = vrcp.pop %v546
  %v548 = vmul.f32 1.0, %v547
  %v549 = vadd.f32 %v383, %v470
  %v550 = vxor.u32 %v549, 2147483648
  %v551 = vmul.f32 %v550, 1.442695
  %v552 = vpow.pop %v551
  %v553 = vadd.f32 %v552, 1.0
  %v554 = vrcp.pop %v553
  %v555 = vmul.f32 1.0, %v554
  %v556 = vmul.f32 %v548, %v539
  %v557 = vadd.f32 %v384, %v556
  %v558 = vtanh.pop %v557
  %v559 = vsub.f32 1.0, %v555
  %v560 = vmul.f32 %v559, %v558
  %v561 = vmul.f32 %v555, %v378
  %v562 = vadd.f32 %v560, %v561
  %563 = vst [vmem:[%s6] sm:$0xff] %v562
  %s564 = smul.u32 1, 3
  %s565 = smul.addr %s564, 8
  %s566 = scalar_lea.vmem [#allocation2], %s565
  %v567 = vld [vmem:[%s566] sm:$0xff]
  %v568 = vld [vmem:[%s566 + $0x8] sm:$0xff]
  %v569 = vld [vmem:[%s566 + $0x10] sm:$0xff]
  %570 = vmatprep.subr.mxu0 %v330
  %571 = vmatpush1.msra.mxu0 %v329
  %572 = vmatprep.subr.mxu0 %v333
  %573 = vmatpush1.msra.mxu0 %v332
  %574 = vmatprep.subr.mxu0 %v336
  %575 = vmatpush1.msra.mxu0 %v335
  %576 = vmatprep.subr.mxu0 %v339
  %577 = vmatpush1.msra.mxu0 %v338
  %578 = vmatprep.subr.mxu0 %v342
  %579 = vmatpush1.msra.mxu0 %v341
  %580 = vmatprep.subr.mxu0 %v345
  %581 = vmatpush1.msra.mxu0 %v344
  %582 = vmatprep.subr.mxu0 %v348
  %583 = vmatpush1.msra.mxu0 %v347
  %584 = vmatprep.subr.mxu0 %v351
  %585 = vmatpush1.msra.mxu0 %v350
  %586 = vmatprep.subr.mxu0 %v354
  %587 = vmatpush1.msra.mxu0 %v353
  %588 = vmatprep.subr.mxu0 %v357
  %589 = vmatpush1.msra.mxu0 %v356
  %590 = vmatprep.subr.mxu0 %v360
  %591 = vmatpush1.msra.mxu0 %v359
  %592 = vmatprep.subr.mxu0 %v363
  %593 = vmatpush1.msra.mxu0 %v362
  %594 = vmatprep.subr.mxu0 %v366
  %595 = vmatpush1.msra.mxu0 %v365
  %596 = vmatprep.subr.mxu0 %v369
  %597 = vmatpush1.msra.mxu0 %v368
  %598 = vmatprep.subr.mxu0 %v372
  %599 = vmatpush1.msra.mxu0 %v371
  %600 = vmatprep.subr.mxu0 %v375
  %601 = vmatpush1.msra.mxu0 %v374
  %602 = vmatprep.subr.mxu0 0.0
  %603 = vmatpush1.msra.mxu0 0.0
  %604 = vmatprep.subr.mxu0 0.0
  %605 = vmatpush1.msra.mxu0 0.0
  %606 = vmatprep.subr.mxu0 0.0
  %607 = vmatpush1.msra.mxu0 0.0
  %608 = vmatprep.subr.mxu0 0.0
  %609 = vmatpush1.msra.mxu0 0.0
  %610 = vmatprep.subr.mxu0 0.0
  %611 = vmatpush1.msra.mxu0 0.0
  %612 = vmatprep.subr.mxu0 0.0
  %613 = vmatpush1.msra.mxu0 0.0
  %614 = vmatprep.subr.mxu0 0.0
  %615 = vmatpush1.msra.mxu0 0.0
  %616 = vmatprep.subr.mxu0 0.0
  %617 = vmatpush1.msra.mxu0 0.0
  %618 = vmatprep.subr.mxu0 0.0
  %619 = vmatpush1.msra.mxu0 0.0
  %620 = vmatprep.subr.mxu0 0.0
  %621 = vmatpush1.msra.mxu0 0.0
  %622 = vmatprep.subr.mxu0 0.0
  %623 = vmatpush1.msra.mxu0 0.0
  %624 = vmatprep.subr.mxu0 0.0
  %625 = vmatpush1.msra.mxu0 0.0
  %626 = vmatprep.subr.mxu0 0.0
  %627 = vmatpush1.msra.mxu0 0.0
  %628 = vmatprep.subr.mxu0 0.0
  %629 = vmatpush1.msra.mxu0 0.0
  %630 = vmatprep.subr.mxu0 0.0
  %631 = vmatpush1.msra.mxu0 0.0
  %632 = vmatprep.subr.mxu0 0.0
  %633 = vmatpush1.msra.mxu0 0.0
  %634 = vmatprep.mubr.f32.mxu0 0.0
  %635 = vmatmul.mubr.f32.gmra.mrb[0].mxu0 %v562
  %v636 = vpop.f32.mrb[0].mxu0
  %v637 = vadd.f32 %v389, %v636
  %v638 = vpop.f32.mrb[0].mxu0
  %v639 = vadd.f32 %v393, %v638
  %640 = vdwg.mxu0
  %641 = vmatprep.subr.mxu0 0.0
  %642 = vmatpush1.msra.mxu0 %v331
  %643 = vmatprep.subr.mxu0 0.0
  %644 = vmatpush1.msra.mxu0 %v334
  %645 = vmatprep.subr.mxu0 0.0
  %646 = vmatpush1.msra.mxu0 %v337
  %647 = vmatprep.subr.mxu0 0.0
  %648 = vmatpush1.msra.mxu0 %v340
  %649 = vmatprep.subr.mxu0 0.0
  %650 = vmatpush1.msra.mxu0 %v343
  %651 = vmatprep.subr.mxu0 0.0
  %652 = vmatpush1.msra.mxu0 %v346
  %653 = vmatprep.subr.mxu0 0.0
  %654 = vmatpush1.msra.mxu0 %v349
  %655 = vmatprep.subr.mxu0 0.0
  %656 = vmatpush1.msra.mxu0 %v352
  %657 = vmatprep.subr.mxu0 0.0
  %658 = vmatpush1.msra.mxu0 %v355
  %659 = vmatprep.subr.mxu0 0.0
  %660 = vmatpush1.msra.mxu0 %v358
  %661 = vmatprep.subr.mxu0 0.0
  %662 = vmatpush1.msra.mxu0 %v361
  %663 = vmatprep.subr.mxu0 0.0
  %664 = vmatpush1.msra.mxu0 %v364
  %665 = vmatprep.subr.mxu0 0.0
  %666 = vmatpush1.msra.mxu0 %v367
  %667 = vmatprep.subr.mxu0 0.0
  %668 = vmatpush1.msra.mxu0 %v370
  %669 = vmatprep.subr.mxu0 0.0
  %670 = vmatpush1.msra.mxu0 %v373
  %671 = vmatprep.subr.mxu0 0.0
  %672 = vmatpush1.msra.mxu0 %v376
  %673 = vmatprep.subr.mxu0 0.0
  %674 = vmatpush1.msra.mxu0 0.0
  %675 = vmatprep.subr.mxu0 0.0
  %676 = vmatpush1.msra.mxu0 0.0
  %677 = vmatprep.subr.mxu0 0.0
  %678 = vmatpush1.msra.mxu0 0.0
  %679 = vmatprep.subr.mxu0 0.0
  %680 = vmatpush1.msra.mxu0 0.0
  %681 = vmatprep.subr.mxu0 0.0
  %682 = vmatpush1.msra.mxu0 0.0
  %683 = vmatprep.subr.mxu0 0.0
  %684 = vmatpush1.msra.mxu0 0.0
  %685 = vmatprep.subr.mxu0 0.0
  %686 = vmatpush1.msra.mxu0 0.0
  %687 = vmatprep.subr.mxu0 0.0
  %688 = vmatpush1.msra.mxu0 0.0
  %689 = vmatprep.subr.mxu0 0.0
  %690 = vmatpush1.msra.mxu0 0.0
  %691 = vmatprep.subr.mxu0 0.0
  %692 = vmatpush1.msra.mxu0 0.0
  %693 = vmatprep.subr.mxu0 0.0
  %694 = vmatpush1.msra.mxu0 0.0
  %695 = vmatprep.subr.mxu0 0.0
  %696 = vmatpush1.msra.mxu0 0.0
  %697 = vmatprep.subr.mxu0 0.0
  %698 = vmatpush1.msra.mxu0 0.0
  %699 = vmatprep.subr.mxu0 0.0
  %700 = vmatpush1.msra.mxu0 0.0
  %701 = vmatprep.subr.mxu0 0.0
  %702 = vmatpush1.msra.mxu0 0.0
  %703 = vmatprep.subr.mxu0 0.0
  %704 = vmatpush1.msra.mxu0 0.0
  %705 = vmatprep.mubr.f32.mxu0 0.0
  %706 = vmatmul.mubr.f32.gmra.mrb[0].mxu0 %v562
  %v707 = vpop.f32.mrb[0].mxu0
  %v708 = vadd.f32 %v397, %v707
  %v709 = vpop.f32.mrb[0].mxu0
  %710 = vdwg.mxu0
  %v711 = vadd.f32 %v567, %v637
  %v712 = vxor.u32 %v711, 2147483648
  %v713 = vmul.f32 %v712, 1.442695
  %v714 = vpow.pop %v713
  %v715 = vadd.f32 %v714, 1.0
  %v716 = vrcp.pop %v715
  %v717 = vmul.f32 1.0, %v716
  %v718 = vadd.f32 %v568, %v639
  %v719 = vxor.u32 %v718, 2147483648
  %v720 = vmul.f32 %v719, 1.442695
  %v721 = vpow.pop %v720
  %v722 = vadd.f32 %v721, 1.0
  %v723 = vrcp.pop %v722
  %v724 = vmul.f32 1.0, %v723
  %v725 = vmul.f32 %v717, %v708
  %v726 = vadd.f32 %v569, %v725
  %v727 = vtanh.pop %v726
  %v728 = vsub.f32 1.0, %v724
  %v729 = vmul.f32 %v728, %v727
  %v730 = vmul.f32 %v724, %v562
  %v731 = vadd.f32 %v729, %v730
  %s732 = scalar_lea.vmem %s6, 8
  %733 = vst [vmem:[%s732] sm:$0xff] %v731
  %s734 = smul.u32 2, 3
  %s735 = smul.addr %s734, 8
  %s736 = scalar_lea.vmem [#allocation2], %s735
  %v737 = vld [vmem:[%s736] sm:$0xff]
  %v738 = vld [vmem:[%s736 + $0x8] sm:$0xff]
  %v739 = vld [vmem:[%s736 + $0x10] sm:$0xff]
  %740 = vmatprep.subr.mxu0 %v330
  %741 = vmatpush1.msra.mxu0 %v329
  %742 = vmatprep.subr.mxu0 %v333
  %743 = vmatpush1.msra.mxu0 %v332
  %744 = vmatprep.subr.mxu0 %v336
  %745 = vmatpush1.msra.mxu0 %v335
  %746 = vmatprep.subr.mxu0 %v339
  %747 = vmatpush1.msra.mxu0 %v338
  %748 = vmatprep.subr.mxu0 %v342
  %749 = vmatpush1.msra.mxu0 %v341
  %750 = vmatprep.subr.mxu0 %v345
  %751 = vmatpush1.msra.mxu0 %v344
  %752 = vmatprep.subr.mxu0 %v348
  %753 = vmatpush1.msra.mxu0 %v347
  %754 = vmatprep.subr.mxu0 %v351
  %755 = vmatpush1.msra.mxu0 %v350
  %756 = vmatprep.subr.mxu0 %v354
  %757 = vmatpush1.msra.mxu0 %v353
  %758 = vmatprep.subr.mxu0 %v357
  %759 = vmatpush1.msra.mxu0 %v356
  %760 = vmatprep.subr.mxu0 %v360
  %761 = vmatpush1.msra.mxu0 %v359
  %762 = vmatprep.subr.mxu0 %v363
  %763 = vmatpush1.msra.mxu0 %v362
  %764 = vmatprep.subr.mxu0 %v366
  %765 = vmatpush1.msra.mxu0 %v365
  %766 = vmatprep.subr.mxu0 %v369
  %767 = vmatpush1.msra.mxu0 %v368
  %768 = vmatprep.subr.mxu0 %v372
  %769 = vmatpush1.msra.mxu0 %v371
  %770 = vmatprep.subr.mxu0 %v375
  %771 = vmatpush1.msra.mxu0 %v374
  %772 = vmatprep.subr.mxu0 0.0
  %773 = vmatpush1.msra.mxu0 0.0
  %774 = vmatprep.subr.mxu0 0.0
  %775 = vmatpush1.msra.mxu0 0.0
  %776 = vmatprep.subr.mxu0 0.0
  %777 = vmatpush1.msra.mxu0 0.0
  %778 = vmatprep.subr.mxu0 0.0
  %779 = vmatpush1.msra.mxu0 0.0
  %780 = vmatprep.subr.mxu0 0.0
  %781 = vmatpush1.msra.mxu0 0.0
  %782 = vmatprep.subr.mxu0 0.0
  %783 = vmatpush1.msra.mxu0 0.0
  %784 = vmatprep.subr.mxu0 0.0
  %785 = vmatpush1.msra.mxu0 0.0
  %786 = vmatprep.subr.mxu0 0.0
  %787 = vmatpush1.msra.mxu0 0.0
  %788 = vmatprep.subr.mxu0 0.0
  %789 = vmatpush1.msra.mxu0 0.0
  %790 = vmatprep.subr.mxu0 0.0
  %791 = vmatpush1.msra.mxu0 0.0
  %792 = vmatprep.subr.mxu0 0.0
  %793 = vmatpush1.msra.mxu0 0.0
  %794 = vmatprep.subr.mxu0 0.0
  %795 = vmatpush1.msra.mxu0 0.0
  %796 = vmatprep.subr.mxu0 0.0
  %797 = vmatpush1.msra.mxu0 0.0
  %798 = vmatprep.subr.mxu0 0.0
  %799 = vmatpush1.msra.mxu0 0.0
  %800 = vmatprep.subr.mxu0 0.0
  %801 = vmatpush1.msra.mxu0 0.0
  %802 = vmatprep.subr.mxu0 0.0
  %803 = vmatpush1.msra.mxu0 0.0
  %804 = vmatprep.mubr.f32.mxu0 0.0
  %805 = vmatmul.mubr.f32.gmra.mrb[0].mxu0 %v731
  %v806 = vpop.f32.mrb[0].mxu0
  %v807 = vadd.f32 %v389, %v806
  %v808 = vpop.f32.mrb[0].mxu0
  %v809 = vadd.f32 %v393, %v808
  %810 = vdwg.mxu0
  %811 = vmatprep.subr.mxu0 0.0
  %812 = vmatpush1.msra.mxu0 %v331
  %813 = vmatprep.subr.mxu0 0.0
  %814 = vmatpush1.msra.mxu0 %v334
  %815 = vmatprep.subr.mxu0 0.0
  %816 = vmatpush1.msra.mxu0 %v337
  %817 = vmatprep.subr.mxu0 0.0
  %818 = vmatpush1.msra.mxu0 %v340
  %819 = vmatprep.subr.mxu0 0.0
  %820 = vmatpush1.msra.mxu0 %v343
  %821 = vmatprep.subr.mxu0 0.0
  %822 = vmatpush1.msra.mxu0 %v346
  %823 = vmatprep.subr.mxu0 0.0
  %824 = vmatpush1.msra.mxu0 %v349
  %825 = vmatprep.subr.mxu0 0.0
  %826 = vmatpush1.msra.mxu0 %v352
  %827 = vmatprep.subr.mxu0 0.0
  %828 = vmatpush1.msra.mxu0 %v355
  %829 = vmatprep.subr.mxu0 0.0
  %830 = vmatpush1.msra.mxu0 %v358
  %831 = vmatprep.subr.mxu0 0.0
  %832 = vmatpush1.msra.mxu0 %v361
  %833 = vmatprep.subr.mxu0 0.0
  %834 = vmatpush1.msra.mxu0 %v364
  %835 = vmatprep.subr.mxu0 0.0
  %836 = vmatpush1.msra.mxu0 %v367
  %837 = vmatprep.subr.mxu0 0.0
  %838 = vmatpush1.msra.mxu0 %v370
  %839 = vmatprep.subr.mxu0 0.0
  %840 = vmatpush1.msra.mxu0 %v373
  %841 = vmatprep.subr.mxu0 0.0
  %842 = vmatpush1.msra.mxu0 %v376
  %843 = vmatprep.subr.mxu0 0.0
  %844 = vmatpush1.msra.mxu0 0.0
  %845 = vmatprep.subr.mxu0 0.0
  %846 = vmatpush1.msra.mxu0 0.0
  %847 = vmatprep.subr.mxu0 0.0
  %848 = vmatpush1.msra.mxu0 0.0
  %849 = vmatprep.subr.mxu0 0.0
  %850 = vmatpush1.msra.mxu0 0.0
  %851 = vmatprep.subr.mxu0 0.0
  %852 = vmatpush1.msra.mxu0 0.0
  %853 = vmatprep.subr.mxu0 0.0
  %854 = vmatpush1.msra.mxu0 0.0
  %855 = vmatprep.subr.mxu0 0.0
  %856 = vmatpush1.msra.mxu0 0.0
  %857 = vmatprep.subr.mxu0 0.0
  %858 = vmatpush1.msra.mxu0 0.0
  %859 = vmatprep.subr.mxu0 0.0
  %860 = vmatpush1.msra.mxu0 0.0
  %861 = vmatprep.subr.mxu0 0.0
  %862 = vmatpush1.msra.mxu0 0.0
  %863 = vmatprep.subr.mxu0 0.0
  %864 = vmatpush1.msra.mxu0 0.0
  %865 = vmatprep.subr.mxu0 0.0
  %866 = vmatpush1.msra.mxu0 0.0
  %867 = vmatprep.subr.mxu0 0.0
  %868 = vmatpush1.msra.mxu0 0.0
  %869 = vmatprep.subr.mxu0 0.0
  %870 = vmatpush1.msra.mxu0 0.0
  %871 = vmatprep.subr.mxu0 0.0
  %872 = vmatpush1.msra.mxu0 0.0
  %873 = vmatprep.subr.mxu0 0.0
  %874 = vmatpush1.msra.mxu0 0.0
  %875 = vmatprep.mubr.f32.mxu0 0.0
  %876 = vmatmul.mubr.f32.gmra.mrb[0].mxu0 %v731
  %v877 = vpop.f32.mrb[0].mxu0
  %v878 = vadd.f32 %v397, %v877
  %v879 = vpop.f32.mrb[0].mxu0
  %880 = vdwg.mxu0
  %v881 = vadd.f32 %v737, %v807
  %v882 = vxor.u32 %v881, 2147483648
  %v883 = vmul.f32 %v882, 1.442695
  %v884 = vpow.pop %v883
  %v885 = vadd.f32 %v884, 1.0
  %v886 = vrcp.pop %v885
  %v887 = vmul.f32 1.0, %v886
  %v888 = vadd.f32 %v738, %v809
  %v889 = vxor.u32 %v888, 2147483648
  %v890 = vmul.f32 %v889, 1.442695
  %v891 = vpow.pop %v890
  %v892 = vadd.f32 %v891, 1.0
  %v893 = vrcp.pop %v892
  %v894 = vmul.f32 1.0, %v893
  %v895 = vmul.f32 %v887, %v878
  %v896 = vadd.f32 %v739, %v895
  %v897 = vtanh.pop %v896
  %v898 = vsub.f32 1.0, %v894
  %v899 = vmul.f32 %v898, %v897
  %v900 = vmul.f32 %v894, %v731
  %v901 = vadd.f32 %v899, %v900
  %s902 = scalar_lea.vmem %s6, 16
  %903 = vst [vmem:[%s902] sm:$0xff] %v901
  %s904 = smul.u32 3, 3
  %s905 = smul.addr %s904, 8
  %s906 = scalar_lea.vmem [#allocation2], %s905
  %v907 = vld [vmem:[%s906] sm:$0xff]
  %v908 = vld [vmem:[%s906 + $0x8] sm:$0xff]
  %v909 = vld [vmem:[%s906 + $0x10] sm:$0xff]
  %910 = vmatprep.subr.mxu0 %v330
  %911 = vmatpush1.msra.mxu0 %v329
  %912 = vmatprep.subr.mxu0 %v333
  %913 = vmatpush1.msra.mxu0 %v332
  %914 = vmatprep.subr.mxu0 %v336
  %915 = vmatpush1.msra.mxu0 %v335
  %916 = vmatprep.subr.mxu0 %v339
  %917 = vmatpush1.msra.mxu0 %v338
  %918 = vmatprep.subr.mxu0 %v342
  %919 = vmatpush1.msra.mxu0 %v341
  %920 = vmatprep.subr.mxu0 %v345
  %921 = vmatpush1.msra.mxu0 %v344
  %922 = vmatprep.subr.mxu0 %v348
  %923 = vmatpush1.msra.mxu0 %v347
  %924 = vmatprep.subr.mxu0 %v351
  %925 = vmatpush1.msra.mxu0 %v350
  %926 = vmatprep.subr.mxu0 %v354
  %927 = vmatpush1.msra.mxu0 %v353
  %928 = vmatprep.subr.mxu0 %v357
  %929 = vmatpush1.msra.mxu0 %v356
  %930 = vmatprep.subr.mxu0 %v360
  %931 = vmatpush1.msra.mxu0 %v359
  %932 = vmatprep.subr.mxu0 %v363
  %933 = vmatpush1.msra.mxu0 %v362
  %934 = vmatprep.subr.mxu0 %v366
  %935 = vmatpush1.msra.mxu0 %v365
  %936 = vmatprep.subr.mxu0 %v369
  %937 = vmatpush1.msra.mxu0 %v368
  %938 = vmatprep.subr.mxu0 %v372
  %939 = vmatpush1.msra.mxu0 %v371
  %940 = vmatprep.subr.mxu0 %v375
  %941 = vmatpush1.msra.mxu0 %v374
  %942 = vmatprep.subr.mxu0 0.0
  %943 = vmatpush1.msra.mxu0 0.0
  %944 = vmatprep.subr.mxu0 0.0
  %945 = vmatpush1.msra.mxu0 0.0
  %946 = vmatprep.subr.mxu0 0.0
  %947 = vmatpush1.msra.mxu0 0.0
  %948 = vmatprep.subr.mxu0 0.0
  %949 = vmatpush1.msra.mxu0 0.0
  %950 = vmatprep.subr.mxu0 0.0
  %951 = vmatpush1.msra.mxu0 0.0
  %952 = vmatprep.subr.mxu0 0.0
  %953 = vmatpush1.msra.mxu0 0.0
  %954 = vmatprep.subr.mxu0 0.0
  %955 = vmatpush1.msra.mxu0 0.0
  %956 = vmatprep.subr.mxu0 0.0
  %957 = vmatpush1.msra.mxu0 0.0
  %958 = vmatprep.subr.mxu0 0.0
  %959 = vmatpush1.msra.mxu0 0.0
  %960 = vmatprep.subr.mxu0 0.0
  %961 = vmatpush1.msra.mxu0 0.0
  %962 = vmatprep.subr.mxu0 0.0
  %963 = vmatpush1.msra.mxu0 0.0
  %964 = vmatprep.subr.mxu0 0.0
  %965 = vmatpush1.msra.mxu0 0.0
  %966 = vmatprep.subr.mxu0 0.0
  %967 = vmatpush1.msra.mxu0 0.0
  %968 = vmatprep.subr.mxu0 0.0
  %969 = vmatpush1.msra.mxu0 0.0
  %970 = vmatprep.subr.mxu0 0.0
  %971 = vmatpush1.msra.mxu0 0.0
  %972 = vmatprep.subr.mxu0 0.0
  %973 = vmatpush1.msra.mxu0 0.0
  %974 = vmatprep.mubr.f32.mxu0 0.0
  %975 = vmatmul.mubr.f32.gmra.mrb[0].mxu0 %v901
  %v976 = vpop.f32.mrb[0].mxu0
  %v977 = vadd.f32 %v389, %v976
  %v978 = vpop.f32.mrb[0].mxu0
  %v979 = vadd.f32 %v393, %v978
  %980 = vdwg.mxu0
  %981 = vmatprep.subr.mxu0 0.0
  %982 = vmatpush1.msra.mxu0 %v331
  %983 = vmatprep.subr.mxu0 0.0
  %984 = vmatpush1.msra.mxu0 %v334
  %985 = vmatprep.subr.mxu0 0.0
  %986 = vmatpush1.msra.mxu0 %v337
  %987 = vmatprep.subr.mxu0 0.0
  %988 = vmatpush1.msra.mxu0 %v340
  %989 = vmatprep.subr.mxu0 0.0
  %990 = vmatpush1.msra.mxu0 %v343
  %991 = vmatprep.subr.mxu0 0.0
  %992 = vmatpush1.msra.mxu0 %v346
  %993 = vmatprep.subr.mxu0 0.0
  %994 = vmatpush1.msra.mxu0 %v349
  %995 = vmatprep.subr.mxu0 0.0
  %996 = vmatpush1.msra.mxu0 %v352
  %997 = vmatprep.subr.mxu0 0.0
  %998 = vmatpush1.msra.mxu0 %v355
  %999 = vmatprep.subr.mxu0 0.0
  %1000 = vmatpush1.msra.mxu0 %v358
  %1001 = vmatprep.subr.mxu0 0.0
  %1002 = vmatpush1.msra.mxu0 %v361
  %1003 = vmatprep.subr.mxu0 0.0
  %1004 = vmatpush1.msra.mxu0 %v364
  %1005 = vmatprep.subr.mxu0 0.0
  %1006 = vmatpush1.msra.mxu0 %v367
  %1007 = vmatprep.subr.mxu0 0.0
  %1008 = vmatpush1.msra.mxu0 %v370
  %1009 = vmatprep.subr.mxu0 0.0
  %1010 = vmatpush1.msra.mxu0 %v373
  %1011 = vmatprep.subr.mxu0 0.0
  %1012 = vmatpush1.msra.mxu0 %v376
  %1013 = vmatprep.subr.mxu0 0.0
  %1014 = vmatpush1.msra.mxu0 0.0
  %1015 = vmatprep.subr.mxu0 0.0
  %1016 = vmatpush1.msra.mxu0 0.0
  %1017 = vmatprep.subr.mxu0 0.0
  %1018 = vmatpush1.msra.mxu0 0.0
  %1019 = vmatprep.subr.mxu0 0.0
  %1020 = vmatpush1.msra.mxu0 0.0
  %1021 = vmatprep.subr.mxu0 0.0
  %1022 = vmatpush1.msra.mxu0 0.0
  %1023 = vmatprep.subr.mxu0 0.0
  %1024 = vmatpush1.msra.mxu0 0.0
  %1025 = vmatprep.subr.mxu0 0.0
  %1026 = vmatpush1.msra.mxu0 0.0
  %1027 = vmatprep.subr.mxu0 0.0
  %1028 = vmatpush1.msra.mxu0 0.0
  %1029 = vmatprep.subr.mxu0 0.0
  %1030 = vmatpush1.msra.mxu0 0.0
  %1031 = vmatprep.subr.mxu0 0.0
  %1032 = vmatpush1.msra.mxu0 0.0
  %1033 = vmatprep.subr.mxu0 0.0
  %1034 = vmatpush1.msra.mxu0 0.0
  %1035 = vmatprep.subr.mxu0 0.0
  %1036 = vmatpush1.msra.mxu0 0.0
  %1037 = vmatprep.subr.mxu0 0.0
  %1038 = vmatpush1.msra.mxu0 0.0
  %1039 = vmatprep.subr.mxu0 0.0
  %1040 = vmatpush1.msra.mxu0 0.0
  %1041 = vmatprep.subr.mxu0 0.0
  %1042 = vmatpush1.msra.mxu0 0.0
  %1043 = vmatprep.subr.mxu0 0.0
  %1044 = vmatpush1.msra.mxu0 0.0
  %1045 = vmatprep.mubr.f32.mxu0 0.0
  %1046 = vmatmul.mubr.f32.gmra.mrb[0].mxu0 %v901
  %v1047 = vpop.f32.mrb[0].mxu0
  %v1048 = vadd.f32 %v397, %v1047
  %v1049 = vpop.f32.mrb[0].mxu0
  %1050 = vdwg.mxu0
  %v1051 = vadd.f32 %v907, %v977
  %v1052 = vxor.u32 %v1051, 2147483648
  %v1053 = vmul.f32 %v1052, 1.442695
  %v1054 = vpow.pop %v1053
  %v1055 = vadd.f32 %v1054, 1.0
  %v1056 = vrcp.pop %v1055
  %v1057 = vmul.f32 1.0, %v1056
  %v1058 = vadd.f32 %v908, %v979
  %v1059 = vxor.u32 %v1058, 2147483648
  %v1060 = vmul.f32 %v1059, 1.442695
  %v1061 = vpow.pop %v1060
  %v1062 = vadd.f32 %v1061, 1.0
  %v1063 = vrcp.pop %v1062
  %v1064 = vmul.f32 1.0, %v1063
  %v1065 = vmul.f32 %v1057, %v1048
  %v1066 = vadd.f32 %v909, %v1065
  %v1067 = vtanh.pop %v1066
  %v1068 = vsub.f32 1.0, %v1064
  %v1069 = vmul.f32 %v1068, %v1067
  %v1070 = vmul.f32 %v1064, %v901
  %v1071 = vadd.f32 %v1069, %v1070
  %s1072 = scalar_lea.vmem %s6, 24
  %1073 = vst [vmem:[%s1072] sm:$0xff] %v1071
  %s1074 = smul.u32 4, 3
  %s1075 = smul.addr %s1074, 8
  %s1076 = scalar_lea.vmem [#allocation2], %s1075
  %v1077 = vld [vmem:[%s1076] sm:$0xff]
  %v1078 = vld [vmem:[%s1076 + $0x8] sm:$0xff]
  %v1079 = vld [vmem:[%s1076 + $0x10] sm:$0xff]
  %1080 = vmatprep.subr.mxu0 %v330
  %1081 = vmatpush1.msra.mxu0 %v329
  %1082 = vmatprep.subr.mxu0 %v333
  %1083 = vmatpush1.msra.mxu0 %v332
  %1084 = vmatprep.subr.mxu0 %v336
  %1085 = vmatpush1.msra.mxu0 %v335
  %1086 = vmatprep.subr.mxu0 %v339
  %1087 = vmatpush1.msra.mxu0 %v338
  %1088 = vmatprep.subr.mxu0 %v342
  %1089 = vmatpush1.msra.mxu0 %v341
  %1090 = vmatprep.subr.mxu0 %v345
  %1091 = vmatpush1.msra.mxu0 %v344
  %1092 = vmatprep.subr.mxu0 %v348
  %1093 = vmatpush1.msra.mxu0 %v347
  %1094 = vmatprep.subr.mxu0 %v351
  %1095 = vmatpush1.msra.mxu0 %v350
  %1096 = vmatprep.subr.mxu0 %v354
  %1097 = vmatpush1.msra.mxu0 %v353
  %1098 = vmatprep.subr.mxu0 %v357
  %1099 = vmatpush1.msra.mxu0 %v356
  %1100 = vmatprep.subr.mxu0 %v360
  %1101 = vmatpush1.msra.mxu0 %v359
  %1102 = vmatprep.subr.mxu0 %v363
  %1103 = vmatpush1.msra.mxu0 %v362
  %1104 = vmatprep.subr.mxu0 %v366
  %1105 = vmatpush1.msra.mxu0 %v365
  %1106 = vmatprep.subr.mxu0 %v369
  %1107 = vmatpush1.msra.mxu0 %v368
  %1108 = vmatprep.subr.mxu0 %v372
  %1109 = vmatpush1.msra.mxu0 %v371
  %1110 = vmatprep.subr.mxu0 %v375
  %1111 = vmatpush1.msra.mxu0 %v374
  %1112 = vmatprep.subr.mxu0 0.0
  %1113 = vmatpush1.msra.mxu0 0.0
  %1114 = vmatprep.subr.mxu0 0.0
  %1115 = vmatpush1.msra.mxu0 0.0
  %1116 = vmatprep.subr.mxu0 0.0
  %1117 = vmatpush1.msra.mxu0 0.0
  %1118 = vmatprep.subr.mxu0 0.0
  %1119 = vmatpush1.msra.mxu0 0.0
  %1120 = vmatprep.subr.mxu0 0.0
  %1121 = vmatpush1.msra.mxu0 0.0
  %1122 = vmatprep.subr.mxu0 0.0
  %1123 = vmatpush1.msra.mxu0 0.0
  %1124 = vmatprep.subr.mxu0 0.0
  %1125 = vmatpush1.msra.mxu0 0.0
  %1126 = vmatprep.subr.mxu0 0.0
  %1127 = vmatpush1.msra.mxu0 0.0
  %1128 = vmatprep.subr.mxu0 0.0
  %1129 = vmatpush1.msra.mxu0 0.0
  %1130 = vmatprep.subr.mxu0 0.0
  %1131 = vmatpush1.msra.mxu0 0.0
  %1132 = vmatprep.subr.mxu0 0.0
  %1133 = vmatpush1.msra.mxu0 0.0
  %1134 = vmatprep.subr.mxu0 0.0
  %1135 = vmatpush1.msra.mxu0 0.0
  %1136 = vmatprep.subr.mxu0 0.0
  %1137 = vmatpush1.msra.mxu0 0.0
  %1138 = vmatprep.subr.mxu0 0.0
  %1139 = vmatpush1.msra.mxu0 0.0
  %1140 = vmatprep.subr.mxu0 0.0
  %1141 = vmatpush1.msra.mxu0 0.0
  %1142 = vmatprep.subr.mxu0 0.0
  %1143 = vmatpush1.msra.mxu0 0.0
  %1144 = vmatprep.mubr.f32.mxu0 0.0
  %1145 = vmatmul.mubr.f32.gmra.mrb[0].mxu0 %v1071
  %v1146 = vpop.f32.mrb[0].mxu0
  %v1147 = vadd.f32 %v389, %v1146
  %v1148 = vpop.f32.mrb[0].mxu0
  %v1149 = vadd.f32 %v393, %v1148
  %1150 = vdwg.mxu0
  %1151 = vmatprep.subr.mxu0 0.0
  %1152 = vmatpush1.msra.mxu0 %v331
  %1153 = vmatprep.subr.mxu0 0.0
  %1154 = vmatpush1.msra.mxu0 %v334
  %1155 = vmatprep.subr.mxu0 0.0
  %1156 = vmatpush1.msra.mxu0 %v337
  %1157 = vmatprep.subr.mxu0 0.0
  %1158 = vmatpush1.msra.mxu0 %v340
  %1159 = vmatprep.subr.mxu0 0.0
  %1160 = vmatpush1.msra.mxu0 %v343
  %1161 = vmatprep.subr.mxu0 0.0
  %1162 = vmatpush1.msra.mxu0 %v346
  %1163 = vmatprep.subr.mxu0 0.0
  %1164 = vmatpush1.msra.mxu0 %v349
  %1165 = vmatprep.subr.mxu0 0.0
  %1166 = vmatpush1.msra.mxu0 %v352
  %1167 = vmatprep.subr.mxu0 0.0
  %1168 = vmatpush1.msra.mxu0 %v355
  %1169 = vmatprep.subr.mxu0 0.0
  %1170 = vmatpush1.msra.mxu0 %v358
  %1171 = vmatprep.subr.mxu0 0.0
  %1172 = vmatpush1.msra.mxu0 %v361
  %1173 = vmatprep.subr.mxu0 0.0
  %1174 = vmatpush1.msra.mxu0 %v364
  %1175 = vmatprep.subr.mxu0 0.0
  %1176 = vmatpush1.msra.mxu0 %v367
  %1177 = vmatprep.subr.mxu0 0.0
  %1178 = vmatpush1.msra.mxu0 %v370
  %1179 = vmatprep.subr.mxu0 0.0
  %1180 = vmatpush1.msra.mxu0 %v373
  %1181 = vmatprep.subr.mxu0 0.0
  %1182 = vmatpush1.msra.mxu0 %v376
  %1183 = vmatprep.subr.mxu0 0.0
  %1184 = vmatpush1.msra.mxu0 0.0
  %1185 = vmatprep.subr.mxu0 0.0
  %1186 = vmatpush1.msra.mxu0 0.0
  %1187 = vmatprep.subr.mxu0 0.0
  %1188 = vmatpush1.msra.mxu0 0.0
  %1189 = vmatprep.subr.mxu0 0.0
  %1190 = vmatpush1.msra.mxu0 0.0
  %1191 = vmatprep.subr.mxu0 0.0
  %1192 = vmatpush1.msra.mxu0 0.0
  %1193 = vmatprep.subr.mxu0 0.0
  %1194 = vmatpush1.msra.mxu0 0.0
  %1195 = vmatprep.subr.mxu0 0.0
  %1196 = vmatpush1.msra.mxu0 0.0
  %1197 = vmatprep.subr.mxu0 0.0
  %1198 = vmatpush1.msra.mxu0 0.0
  %1199 = vmatprep.subr.mxu0 0.0
  %1200 = vmatpush1.msra.mxu0 0.0
  %1201 = vmatprep.subr.mxu0 0.0
  %1202 = vmatpush1.msra.mxu0 0.0
  %1203 = vmatprep.subr.mxu0 0.0
  %1204 = vmatpush1.msra.mxu0 0.0
  %1205 = vmatprep.subr.mxu0 0.0
  %1206 = vmatpush1.msra.mxu0 0.0
  %1207 = vmatprep.subr.mxu0 0.0
  %1208 = vmatpush1.msra.mxu0 0.0
  %1209 = vmatprep.subr.mxu0 0.0
  %1210 = vmatpush1.msra.mxu0 0.0
  %1211 = vmatprep.subr.mxu0 0.0
  %1212 = vmatpush1.msra.mxu0 0.0
  %1213 = vmatprep.subr.mxu0 0.0
  %1214 = vmatpush1.msra.mxu0 0.0
  %1215 = vmatprep.mubr.f32.mxu0 0.0
  %1216 = vmatmul.mubr.f32.gmra.mrb[0].mxu0 %v1071
  %v1217 = vpop.f32.mrb[0].mxu0
  %v1218 = vadd.f32 %v397, %v1217
  %v1219 = vpop.f32.mrb[0].mxu0
  %1220 = vdwg.mxu0
  %v1221 = vadd.f32 %v1077, %v1147
  %v1222 = vxor.u32 %v1221, 2147483648
  %v1223 = vmul.f32 %v1222, 1.442695
  %v1224 = vpow.pop %v1223
  %v1225 = vadd.f32 %v1224, 1.0
  %v1226 = vrcp.pop %v1225
  %v1227 = vmul.f32 1.0, %v1226
  %v1228 = vadd.f32 %v1078, %v1149
  %v1229 = vxor.u32 %v1228, 2147483648
  %v1230 = vmul.f32 %v1229, 1.442695
  %v1231 = vpow.pop %v1230
  %v1232 = vadd.f32 %v1231, 1.0
  %v1233 = vrcp.pop %v1232
  %v1234 = vmul.f32 1.0, %v1233
  %v1235 = vmul.f32 %v1227, %v1218
  %v1236 = vadd.f32 %v1079, %v1235
  %v1237 = vtanh.pop %v1236
  %v1238 = vsub.f32 1.0, %v1234
  %v1239 = vmul.f32 %v1238, %v1237
  %v1240 = vmul.f32 %v1234, %v1071
  %v1241 = vadd.f32 %v1239, %v1240
  %s1242 = scalar_lea.vmem %s6, 32
  %1243 = vst [vmem:[%s1242] sm:$0xff] %v1241
  %s1244 = smul.u32 5, 3
  %s1245 = smul.addr %s1244, 8
  %s1246 = scalar_lea.vmem [#allocation2], %s1245
  %v1247 = vld [vmem:[%s1246] sm:$0xff]
  %v1248 = vld [vmem:[%s1246 + $0x8] sm:$0xff]
  %v1249 = vld [vmem:[%s1246 + $0x10] sm:$0xff]
  %1250 = vmatprep.subr.mxu0 %v330
  %1251 = vmatpush1.msra.mxu0 %v329
  %1252 = vmatprep.subr.mxu0 %v333
  %1253 = vmatpush1.msra.mxu0 %v332
  %1254 = vmatprep.subr.mxu0 %v336
  %1255 = vmatpush1.msra.mxu0 %v335
  %1256 = vmatprep.subr.mxu0 %v339
  %1257 = vmatpush1.msra.mxu0 %v338
  %1258 = vmatprep.subr.mxu0 %v342
  %1259 = vmatpush1.msra.mxu0 %v341
  %1260 = vmatprep.subr.mxu0 %v345
  %1261 = vmatpush1.msra.mxu0 %v344
  %1262 = vmatprep.subr.mxu0 %v348
  %1263 = vmatpush1.msra.mxu0 %v347
  %1264 = vmatprep.subr.mxu0 %v351
  %1265 = vmatpush1.msra.mxu0 %v350
  %1266 = vmatprep.subr.mxu0 %v354
  %1267 = vmatpush1.msra.mxu0 %v353
  %1268 = vmatprep.subr.mxu0 %v357
  %1269 = vmatpush1.msra.mxu0 %v356
  %1270 = vmatprep.subr.mxu0 %v360
  %1271 = vmatpush1.msra.mxu0 %v359
  %1272 = vmatprep.subr.mxu0 %v363
  %1273 = vmatpush1.msra.mxu0 %v362
  %1274 = vmatprep.subr.mxu0 %v366
  %1275 = vmatpush1.msra.mxu0 %v365
  %1276 = vmatprep.subr.mxu0 %v369
  %1277 = vmatpush1.msra.mxu0 %v368
  %1278 = vmatprep.subr.mxu0 %v372
  %1279 = vmatpush1.msra.mxu0 %v371
  %1280 = vmatprep.subr.mxu0 %v375
  %1281 = vmatpush1.msra.mxu0 %v374
  %1282 = vmatprep.subr.mxu0 0.0
  %1283 = vmatpush1.msra.mxu0 0.0
  %1284 = vmatprep.subr.mxu0 0.0
  %1285 = vmatpush1.msra.mxu0 0.0
  %1286 = vmatprep.subr.mxu0 0.0
  %1287 = vmatpush1.msra.mxu0 0.0
  %1288 = vmatprep.subr.mxu0 0.0
  %1289 = vmatpush1.msra.mxu0 0.0
  %1290 = vmatprep.subr.mxu0 0.0
  %1291 = vmatpush1.msra.mxu0 0.0
  %1292 = vmatprep.subr.mxu0 0.0
  %1293 = vmatpush1.msra.mxu0 0.0
  %1294 = vmatprep.subr.mxu0 0.0
  %1295 = vmatpush1.msra.mxu0 0.0
  %1296 = vmatprep.subr.mxu0 0.0
  %1297 = vmatpush1.msra.mxu0 0.0
  %1298 = vmatprep.subr.mxu0 0.0
  %1299 = vmatpush1.msra.mxu0 0.0
  %1300 = vmatprep.subr.mxu0 0.0
  %1301 = vmatpush1.msra.mxu0 0.0
  %1302 = vmatprep.subr.mxu0 0.0
  %1303 = vmatpush1.msra.mxu0 0.0
  %1304 = vmatprep.subr.mxu0 0.0
  %1305 = vmatpush1.msra.mxu0 0.0
  %1306 = vmatprep.subr.mxu0 0.0
  %1307 = vmatpush1.msra.mxu0 0.0
  %1308 = vmatprep.subr.mxu0 0.0
  %1309 = vmatpush1.msra.mxu0 0.0
  %1310 = vmatprep.subr.mxu0 0.0
  %1311 = vmatpush1.msra.mxu0 0.0
  %1312 = vmatprep.subr.mxu0 0.0
  %1313 = vmatpush1.msra.mxu0 0.0
  %1314 = vmatprep.mubr.f32.mxu0 0.0
  %1315 = vmatmul.mubr.f32.gmra.mrb[0].mxu0 %v1241
  %v1316 = vpop.f32.mrb[0].mxu0
  %v1317 = vadd.f32 %v389, %v1316
  %v1318 = vpop.f32.mrb[0].mxu0
  %v1319 = vadd.f32 %v393, %v1318
  %1320 = vdwg.mxu0
  %1321 = vmatprep.subr.mxu0 0.0
  %1322 = vmatpush1.msra.mxu0 %v331
  %1323 = vmatprep.subr.mxu0 0.0
  %1324 = vmatpush1.msra.mxu0 %v334
  %1325 = vmatprep.subr.mxu0 0.0
  %1326 = vmatpush1.msra.mxu0 %v337
  %1327 = vmatprep.subr.mxu0 0.0
  %1328 = vmatpush1.msra.mxu0 %v340
  %1329 = vmatprep.subr.mxu0 0.0
  %1330 = vmatpush1.msra.mxu0 %v343
  %1331 = vmatprep.subr.mxu0 0.0
  %1332 = vmatpush1.msra.mxu0 %v346
  %1333 = vmatprep.subr.mxu0 0.0
  %1334 = vmatpush1.msra.mxu0 %v349
  %1335 = vmatprep.subr.mxu0 0.0
  %1336 = vmatpush1.msra.mxu0 %v352
  %1337 = vmatprep.subr.mxu0 0.0
  %1338 = vmatpush1.msra.mxu0 %v355
  %1339 = vmatprep.subr.mxu0 0.0
  %1340 = vmatpush1.msra.mxu0 %v358
  %1341 = vmatprep.subr.mxu0 0.0
  %1342 = vmatpush1.msra.mxu0 %v361
  %1343 = vmatprep.subr.mxu0 0.0
  %1344 = vmatpush1.msra.mxu0 %v364
  %1345 = vmatprep.subr.mxu0 0.0
  %1346 = vmatpush1.msra.mxu0 %v367
  %1347 = vmatprep.subr.mxu0 0.0
  %1348 = vmatpush1.msra.mxu0 %v370
  %1349 = vmatprep.subr.mxu0 0.0
  %1350 = vmatpush1.msra.mxu0 %v373
  %1351 = vmatprep.subr.mxu0 0.0
  %1352 = vmatpush1.msra.mxu0 %v376
  %1353 = vmatprep.subr.mxu0 0.0
  %1354 = vmatpush1.msra.mxu0 0.0
  %1355 = vmatprep.subr.mxu0 0.0
  %1356 = vmatpush1.msra.mxu0 0.0
  %1357 = vmatprep.subr.mxu0 0.0
  %1358 = vmatpush1.msra.mxu0 0.0
  %1359 = vmatprep.subr.mxu0 0.0
  %1360 = vmatpush1.msra.mxu0 0.0
  %1361 = vmatprep.subr.mxu0 0.0
  %1362 = vmatpush1.msra.mxu0 0.0
  %1363 = vmatprep.subr.mxu0 0.0
  %1364 = vmatpush1.msra.mxu0 0.0
  %1365 = vmatprep.subr.mxu0 0.0
  %1366 = vmatpush1.msra.mxu0 0.0
  %1367 = vmatprep.subr.mxu0 0.0
  %1368 = vmatpush1.msra.mxu0 0.0
  %1369 = vmatprep.subr.mxu0 0.0
  %1370 = vmatpush1.msra.mxu0 0.0
  %1371 = vmatprep.subr.mxu0 0.0
  %1372 = vmatpush1.msra.mxu0 0.0
  %1373 = vmatprep.subr.mxu0 0.0
  %1374 = vmatpush1.msra.mxu0 0.0
  %1375 = vmatprep.subr.mxu0 0.0
  %1376 = vmatpush1.msra.mxu0 0.0
  %1377 = vmatprep.subr.mxu0 0.0
  %1378 = vmatpush1.msra.mxu0 0.0
  %1379 = vmatprep.subr.mxu0 0.0
  %1380 = vmatpush1.msra.mxu0 0.0
  %1381 = vmatprep.subr.mxu0 0.0
  %1382 = vmatpush1.msra.mxu0 0.0
  %1383 = vmatprep.subr.mxu0 0.0
  %1384 = vmatpush1.msra.mxu0 0.0
  %1385 = vmatprep.mubr.f32.mxu0 0.0
  %1386 = vmatmul.mubr.f32.gmra.mrb[0].mxu0 %v1241
  %v1387 = vpop.f32.mrb[0].mxu0
  %v1388 = vadd.f32 %v397, %v1387
  %v1389 = vpop.f32.mrb[0].mxu0
  %1390 = vdwg.mxu0
  %v1391 = vadd.f32 %v1247, %v1317
  %v1392 = vxor.u32 %v1391, 2147483648
  %v1393 = vmul.f32 %v1392, 1.442695
  %v1394 = vpow.pop %v1393
  %v1395 = vadd.f32 %v1394, 1.0
  %v1396 = vrcp.pop %v1395
  %v1397 = vmul.f32 1.0, %v1396
  %v1398 = vadd.f32 %v1248, %v1319
  %v1399 = vxor.u32 %v1398, 2147483648
  %v1400 = vmul.f32 %v1399, 1.442695
  %v1401 = vpow.pop %v1400
  %v1402 = vadd.f32 %v1401, 1.0
  %v1403 = vrcp.pop %v1402
  %v1404 = vmul.f32 1.0, %v1403
  %v1405 = vmul.f32 %v1397, %v1388
  %v1406 = vadd.f32 %v1249, %v1405
  %v1407 = vtanh.pop %v1406
  %v1408 = vsub.f32 1.0, %v1404
  %v1409 = vmul.f32 %v1408, %v1407
  %v1410 = vmul.f32 %v1404, %v1241
  %v1411 = vadd.f32 %v1409, %v1410
  %s1412 = scalar_lea.vmem %s6, 40
  %1413 = vst [vmem:[%s1412] sm:$0xff] %v1411
  %s1414 = smul.u32 6, 3
  %s1415 = smul.addr %s1414, 8
  %s1416 = scalar_lea.vmem [#allocation2], %s1415
  %v1417 = vld [vmem:[%s1416] sm:$0xff]
  %v1418 = vld [vmem:[%s1416 + $0x8] sm:$0xff]
  %v1419 = vld [vmem:[%s1416 + $0x10] sm:$0xff]
  %1420 = vmatprep.subr.mxu0 %v330
  %1421 = vmatpush1.msra.mxu0 %v329
  %1422 = vmatprep.subr.mxu0 %v333
  %1423 = vmatpush1.msra.mxu0 %v332
  %1424 = vmatprep.subr.mxu0 %v336
  %1425 = vmatpush1.msra.mxu0 %v335
  %1426 = vmatprep.subr.mxu0 %v339
  %1427 = vmatpush1.msra.mxu0 %v338
  %1428 = vmatprep.subr.mxu0 %v342
  %1429 = vmatpush1.msra.mxu0 %v341
  %1430 = vmatprep.subr.mxu0 %v345
  %1431 = vmatpush1.msra.mxu0 %v344
  %1432 = vmatprep.subr.mxu0 %v348
  %1433 = vmatpush1.msra.mxu0 %v347
  %1434 = vmatprep.subr.mxu0 %v351
  %1435 = vmatpush1.msra.mxu0 %v350
  %1436 = vmatprep.subr.mxu0 %v354
  %1437 = vmatpush1.msra.mxu0 %v353
  %1438 = vmatprep.subr.mxu0 %v357
  %1439 = vmatpush1.msra.mxu0 %v356
  %1440 = vmatprep.subr.mxu0 %v360
  %1441 = vmatpush1.msra.mxu0 %v359
  %1442 = vmatprep.subr.mxu0 %v363
  %1443 = vmatpush1.msra.mxu0 %v362
  %1444 = vmatprep.subr.mxu0 %v366
  %1445 = vmatpush1.msra.mxu0 %v365
  %1446 = vmatprep.subr.mxu0 %v369
  %1447 = vmatpush1.msra.mxu0 %v368
  %1448 = vmatprep.subr.mxu0 %v372
  %1449 = vmatpush1.msra.mxu0 %v371
  %1450 = vmatprep.subr.mxu0 %v375
  %1451 = vmatpush1.msra.mxu0 %v374
  %1452 = vmatprep.subr.mxu0 0.0
  %1453 = vmatpush1.msra.mxu0 0.0
  %1454 = vmatprep.subr.mxu0 0.0
  %1455 = vmatpush1.msra.mxu0 0.0
  %1456 = vmatprep.subr.mxu0 0.0
  %1457 = vmatpush1.msra.mxu0 0.0
  %1458 = vmatprep.subr.mxu0 0.0
  %1459 = vmatpush1.msra.mxu0 0.0
  %1460 = vmatprep.subr.mxu0 0.0
  %1461 = vmatpush1.msra.mxu0 0.0
  %1462 = vmatprep.subr.mxu0 0.0
  %1463 = vmatpush1.msra.mxu0 0.0
  %1464 = vmatprep.subr.mxu0 0.0
  %1465 = vmatpush1.msra.mxu0 0.0
  %1466 = vmatprep.subr.mxu0 0.0
  %1467 = vmatpush1.msra.mxu0 0.0
  %1468 = vmatprep.subr.mxu0 0.0
  %1469 = vmatpush1.msra.mxu0 0.0
  %1470 = vmatprep.subr.mxu0 0.0
  %1471 = vmatpush1.msra.mxu0 0.0
  %1472 = vmatprep.subr.mxu0 0.0
  %1473 = vmatpush1.msra.mxu0 0.0
  %1474 = vmatprep.subr.mxu0 0.0
  %1475 = vmatpush1.msra.mxu0 0.0
  %1476 = vmatprep.subr.mxu0 0.0
  %1477 = vmatpush1.msra.mxu0 0.0
  %1478 = vmatprep.subr.mxu0 0.0
  %1479 = vmatpush1.msra.mxu0 0.0
  %1480 = vmatprep.subr.mxu0 0.0
  %1481 = vmatpush1.msra.mxu0 0.0
  %1482 = vmatprep.subr.mxu0 0.0
  %1483 = vmatpush1.msra.mxu0 0.0
  %1484 = vmatprep.mubr.f32.mxu0 0.0
  %1485 = vmatmul.mubr.f32.gmra.mrb[0].mxu0 %v1411
  %v1486 = vpop.f32.mrb[0].mxu0
  %v1487 = vadd.f32 %v389, %v1486
  %v1488 = vpop.f32.mrb[0].mxu0
  %v1489 = vadd.f32 %v393, %v1488
  %1490 = vdwg.mxu0
  %1491 = vmatprep.subr.mxu0 0.0
  %1492 = vmatpush1.msra.mxu0 %v331
  %1493 = vmatprep.subr.mxu0 0.0
  %1494 = vmatpush1.msra.mxu0 %v334
  %1495 = vmatprep.subr.mxu0 0.0
  %1496 = vmatpush1.msra.mxu0 %v337
  %1497 = vmatprep.subr.mxu0 0.0
  %1498 = vmatpush1.msra.mxu0 %v340
  %1499 = vmatprep.subr.mxu0 0.0
  %1500 = vmatpush1.msra.mxu0 %v343
  %1501 = vmatprep.subr.mxu0 0.0
  %1502 = vmatpush1.msra.mxu0 %v346
  %1503 = vmatprep.subr.mxu0 0.0
  %1504 = vmatpush1.msra.mxu0 %v349
  %1505 = vmatprep.subr.mxu0 0.0
  %1506 = vmatpush1.msra.mxu0 %v352
  %1507 = vmatprep.subr.mxu0 0.0
  %1508 = vmatpush1.msra.mxu0 %v355
  %1509 = vmatprep.subr.mxu0 0.0
  %1510 = vmatpush1.msra.mxu0 %v358
  %1511 = vmatprep.subr.mxu0 0.0
  %1512 = vmatpush1.msra.mxu0 %v361
  %1513 = vmatprep.subr.mxu0 0.0
  %1514 = vmatpush1.msra.mxu0 %v364
  %1515 = vmatprep.subr.mxu0 0.0
  %1516 = vmatpush1.msra.mxu0 %v367
  %1517 = vmatprep.subr.mxu0 0.0
  %1518 = vmatpush1.msra.mxu0 %v370
  %1519 = vmatprep.subr.mxu0 0.0
  %1520 = vmatpush1.msra.mxu0 %v373
  %1521 = vmatprep.subr.mxu0 0.0
  %1522 = vmatpush1.msra.mxu0 %v376
  %1523 = vmatprep.subr.mxu0 0.0
  %1524 = vmatpush1.msra.mxu0 0.0
  %1525 = vmatprep.subr.mxu0 0.0
  %1526 = vmatpush1.msra.mxu0 0.0
  %1527 = vmatprep.subr.mxu0 0.0
  %1528 = vmatpush1.msra.mxu0 0.0
  %1529 = vmatprep.subr.mxu0 0.0
  %1530 = vmatpush1.msra.mxu0 0.0
  %1531 = vmatprep.subr.mxu0 0.0
  %1532 = vmatpush1.msra.mxu0 0.0
  %1533 = vmatprep.subr.mxu0 0.0
  %1534 = vmatpush1.msra.mxu0 0.0
  %1535 = vmatprep.subr.mxu0 0.0
  %1536 = vmatpush1.msra.mxu0 0.0
  %1537 = vmatprep.subr.mxu0 0.0
  %1538 = vmatpush1.msra.mxu0 0.0
  %1539 = vmatprep.subr.mxu0 0.0
  %1540 = vmatpush1.msra.mxu0 0.0
  %1541 = vmatprep.subr.mxu0 0.0
  %1542 = vmatpush1.msra.mxu0 0.0
  %1543 = vmatprep.subr.mxu0 0.0
  %1544 = vmatpush1.msra.mxu0 0.0
  %1545 = vmatprep.subr.mxu0 0.0
  %1546 = vmatpush1.msra.mxu0 0.0
  %1547 = vmatprep.subr.mxu0 0.0
  %1548 = vmatpush1.msra.mxu0 0.0
  %1549 = vmatprep.subr.mxu0 0.0
  %1550 = vmatpush1.msra.mxu0 0.0
  %1551 = vmatprep.subr.mxu0 0.0
  %1552 = vmatpush1.msra.mxu0 0.0
  %1553 = vmatprep.subr.mxu0 0.0
  %1554 = vmatpush1.msra.mxu0 0.0
  %1555 = vmatprep.mubr.f32.mxu0 0.0
  %1556 = vmatmul.mubr.f32.gmra.mrb[0].mxu0 %v1411
  %v1557 = vpop.f32.mrb[0].mxu0
  %v1558 = vadd.f32 %v397, %v1557
  %v1559 = vpop.f32.mrb[0].mxu0
  %1560 = vdwg.mxu0
  %v1561 = vadd.f32 %v1417, %v1487
  %v1562 = vxor.u32 %v1561, 2147483648
  %v1563 = vmul.f32 %v1562, 1.442695
  %v1564 = vpow.pop %v1563
  %v1565 = vadd.f32 %v1564, 1.0
  %v1566 = vrcp.pop %v1565
  %v1567 = vmul.f32 1.0, %v1566
  %v1568 = vadd.f32 %v1418, %v1489
  %v1569 = vxor.u32 %v1568, 2147483648
  %v1570 = vmul.f32 %v1569, 1.442695
  %v1571 = vpow.pop %v1570
  %v1572 = vadd.f32 %v1571, 1.0
  %v1573 = vrcp.pop %v1572
  %v1574 = vmul.f32 1.0, %v1573
  %v1575 = vmul.f32 %v1567, %v1558
  %v1576 = vadd.f32 %v1419, %v1575
  %v1577 = vtanh.pop %v1576
  %v1578 = vsub.f32 1.0, %v1574
  %v1579 = vmul.f32 %v1578, %v1577
  %v1580 = vmul.f32 %v1574, %v1411
  %v1581 = vadd.f32 %v1579, %v1580
  %s1582 = scalar_lea.vmem %s6, 48
  %1583 = vst [vmem:[%s1582] sm:$0xff] %v1581
  %s1584 = smul.u32 7, 3
  %s1585 = smul.addr %s1584, 8
  %s1586 = scalar_lea.vmem [#allocation2], %s1585
  %v1587 = vld [vmem:[%s1586] sm:$0xff]
  %v1588 = vld [vmem:[%s1586 + $0x8] sm:$0xff]
  %v1589 = vld [vmem:[%s1586 + $0x10] sm:$0xff]
  %1590 = vmatprep.subr.mxu0 %v330
  %1591 = vmatpush1.msra.mxu0 %v329
  %1592 = vmatprep.subr.mxu0 %v333
  %1593 = vmatpush1.msra.mxu0 %v332
  %1594 = vmatprep.subr.mxu0 %v336
  %1595 = vmatpush1.msra.mxu0 %v335
  %1596 = vmatprep.subr.mxu0 %v339
  %1597 = vmatpush1.msra.mxu0 %v338
  %1598 = vmatprep.subr.mxu0 %v342
  %1599 = vmatpush1.msra.mxu0 %v341
  %1600 = vmatprep.subr.mxu0 %v345
  %1601 = vmatpush1.msra.mxu0 %v344
  %1602 = vmatprep.subr.mxu0 %v348
  %1603 = vmatpush1.msra.mxu0 %v347
  %1604 = vmatprep.subr.mxu0 %v351
  %1605 = vmatpush1.msra.mxu0 %v350
  %1606 = vmatprep.subr.mxu0 %v354
  %1607 = vmatpush1.msra.mxu0 %v353
  %1608 = vmatprep.subr.mxu0 %v357
  %1609 = vmatpush1.msra.mxu0 %v356
  %1610 = vmatprep.subr.mxu0 %v360
  %1611 = vmatpush1.msra.mxu0 %v359
  %1612 = vmatprep.subr.mxu0 %v363
  %1613 = vmatpush1.msra.mxu0 %v362
  %1614 = vmatprep.subr.mxu0 %v366
  %1615 = vmatpush1.msra.mxu0 %v365
  %1616 = vmatprep.subr.mxu0 %v369
  %1617 = vmatpush1.msra.mxu0 %v368
  %1618 = vmatprep.subr.mxu0 %v372
  %1619 = vmatpush1.msra.mxu0 %v371
  %1620 = vmatprep.subr.mxu0 %v375
  %1621 = vmatpush1.msra.mxu0 %v374
  %1622 = vmatprep.subr.mxu0 0.0
  %1623 = vmatpush1.msra.mxu0 0.0
  %1624 = vmatprep.subr.mxu0 0.0
  %1625 = vmatpush1.msra.mxu0 0.0
  %1626 = vmatprep.subr.mxu0 0.0
  %1627 = vmatpush1.msra.mxu0 0.0
  %1628 = vmatprep.subr.mxu0 0.0
  %1629 = vmatpush1.msra.mxu0 0.0
  %1630 = vmatprep.subr.mxu0 0.0
  %1631 = vmatpush1.msra.mxu0 0.0
  %1632 = vmatprep.subr.mxu0 0.0
  %1633 = vmatpush1.msra.mxu0 0.0
  %1634 = vmatprep.subr.mxu0 0.0
  %1635 = vmatpush1.msra.mxu0 0.0
  %1636 = vmatprep.subr.mxu0 0.0
  %1637 = vmatpush1.msra.mxu0 0.0
  %1638 = vmatprep.subr.mxu0 0.0
  %1639 = vmatpush1.msra.mxu0 0.0
  %1640 = vmatprep.subr.mxu0 0.0
  %1641 = vmatpush1.msra.mxu0 0.0
  %1642 = vmatprep.subr.mxu0 0.0
  %1643 = vmatpush1.msra.mxu0 0.0
  %1644 = vmatprep.subr.mxu0 0.0
  %1645 = vmatpush1.msra.mxu0 0.0
  %1646 = vmatprep.subr.mxu0 0.0
  %1647 = vmatpush1.msra.mxu0 0.0
  %1648 = vmatprep.subr.mxu0 0.0
  %1649 = vmatpush1.msra.mxu0 0.0
  %1650 = vmatprep.subr.mxu0 0.0
  %1651 = vmatpush1.msra.mxu0 0.0
  %1652 = vmatprep.subr.mxu0 0.0
  %1653 = vmatpush1.msra.mxu0 0.0
  %1654 = vmatprep.mubr.f32.mxu0 0.0
  %1655 = vmatmul.mubr.f32.gmra.mrb[0].mxu0 %v1581
  %v1656 = vpop.f32.mrb[0].mxu0
  %v1657 = vadd.f32 %v389, %v1656
  %v1658 = vpop.f32.mrb[0].mxu0
  %v1659 = vadd.f32 %v393, %v1658
  %1660 = vdwg.mxu0
  %1661 = vmatprep.subr.mxu0 0.0
  %1662 = vmatpush1.msra.mxu0 %v331
  %1663 = vmatprep.subr.mxu0 0.0
  %1664 = vmatpush1.msra.mxu0 %v334
  %1665 = vmatprep.subr.mxu0 0.0
  %1666 = vmatpush1.msra.mxu0 %v337
  %1667 = vmatprep.subr.mxu0 0.0
  %1668 = vmatpush1.msra.mxu0 %v340
  %1669 = vmatprep.subr.mxu0 0.0
  %1670 = vmatpush1.msra.mxu0 %v343
  %1671 = vmatprep.subr.mxu0 0.0
  %1672 = vmatpush1.msra.mxu0 %v346
  %1673 = vmatprep.subr.mxu0 0.0
  %1674 = vmatpush1.msra.mxu0 %v349
  %1675 = vmatprep.subr.mxu0 0.0
  %1676 = vmatpush1.msra.mxu0 %v352
  %1677 = vmatprep.subr.mxu0 0.0
  %1678 = vmatpush1.msra.mxu0 %v355
  %1679 = vmatprep.subr.mxu0 0.0
  %1680 = vmatpush1.msra.mxu0 %v358
  %1681 = vmatprep.subr.mxu0 0.0
  %1682 = vmatpush1.msra.mxu0 %v361
  %1683 = vmatprep.subr.mxu0 0.0
  %1684 = vmatpush1.msra.mxu0 %v364
  %1685 = vmatprep.subr.mxu0 0.0
  %1686 = vmatpush1.msra.mxu0 %v367
  %1687 = vmatprep.subr.mxu0 0.0
  %1688 = vmatpush1.msra.mxu0 %v370
  %1689 = vmatprep.subr.mxu0 0.0
  %1690 = vmatpush1.msra.mxu0 %v373
  %1691 = vmatprep.subr.mxu0 0.0
  %1692 = vmatpush1.msra.mxu0 %v376
  %1693 = vmatprep.subr.mxu0 0.0
  %1694 = vmatpush1.msra.mxu0 0.0
  %1695 = vmatprep.subr.mxu0 0.0
  %1696 = vmatpush1.msra.mxu0 0.0
  %1697 = vmatprep.subr.mxu0 0.0
  %1698 = vmatpush1.msra.mxu0 0.0
  %1699 = vmatprep.subr.mxu0 0.0
  %1700 = vmatpush1.msra.mxu0 0.0
  %1701 = vmatprep.subr.mxu0 0.0
  %1702 = vmatpush1.msra.mxu0 0.0
  %1703 = vmatprep.subr.mxu0 0.0
  %1704 = vmatpush1.msra.mxu0 0.0
  %1705 = vmatprep.subr.mxu0 0.0
  %1706 = vmatpush1.msra.mxu0 0.0
  %1707 = vmatprep.subr.mxu0 0.0
  %1708 = vmatpush1.msra.mxu0 0.0
  %1709 = vmatprep.subr.mxu0 0.0
  %1710 = vmatpush1.msra.mxu0 0.0
  %1711 = vmatprep.subr.mxu0 0.0
  %1712 = vmatpush1.msra.mxu0 0.0
  %1713 = vmatprep.subr.mxu0 0.0
  %1714 = vmatpush1.msra.mxu0 0.0
  %1715 = vmatprep.subr.mxu0 0.0
  %1716 = vmatpush1.msra.mxu0 0.0
  %1717 = vmatprep.subr.mxu0 0.0
  %1718 = vmatpush1.msra.mxu0 0.0
  %1719 = vmatprep.subr.mxu0 0.0
  %1720 = vmatpush1.msra.mxu0 0.0
  %1721 = vmatprep.subr.mxu0 0.0
  %1722 = vmatpush1.msra.mxu0 0.0
  %1723 = vmatprep.subr.mxu0 0.0
  %1724 = vmatpush1.msra.mxu0 0.0
  %1725 = vmatprep.mubr.f32.mxu0 0.0
  %1726 = vmatmul.mubr.f32.gmra.mrb[0].mxu0 %v1581
  %v1727 = vpop.f32.mrb[0].mxu0
  %v1728 = vadd.f32 %v397, %v1727
  %v1729 = vpop.f32.mrb[0].mxu0
  %1730 = vdwg.mxu0
  %v1731 = vadd.f32 %v1587, %v1657
  %v1732 = vxor.u32 %v1731, 2147483648
  %v1733 = vmul.f32 %v1732, 1.442695
  %v1734 = vpow.pop %v1733
  %v1735 = vadd.f32 %v1734, 1.0
  %v1736 = vrcp.pop %v1735
  %v1737 = vmul.f32 1.0, %v1736
  %v1738 = vadd.f32 %v1588, %v1659
  %v1739 = vxor.u32 %v1738, 2147483648
  %v1740 = vmul.f32 %v1739, 1.442695
  %v1741 = vpow.pop %v1740
  %v1742 = vadd.f32 %v1741, 1.0
  %v1743 = vrcp.pop %v1742
  %v1744 = vmul.f32 1.0, %v1743
  %v1745 = vmul.f32 %v1737, %v1728
  %v1746 = vadd.f32 %v1589, %v1745
  %v1747 = vtanh.pop %v1746
  %v1748 = vsub.f32 1.0, %v1744
  %v1749 = vmul.f32 %v1748, %v1747
  %v1750 = vmul.f32 %v1744, %v1581
  %v1751 = vadd.f32 %v1749, %v1750
  %s1752 = scalar_lea.vmem %s6, 56
  %1753 = vst [vmem:[%s1752] sm:$0xff] %v1751
  %1754 = vst [vmem:[%s7] sm:$0xff] %v1751
  // Predicated region
  $region26: #{seq2seq_forward.3} parent=0 // pred_check
    _
  $region27: #{seq2seq_forward.3} parent=0 // pred_check_branch
    %1756 = sbr.rel (0) target = $region29
  $region28: #{seq2seq_forward.3} parent=0 // pred_region
    _
  $region29: #{seq2seq_forward.3} parent=0 // pred_fallthru
    _
  // Predicated region
  $region30: #{seq2seq_forward.3} parent=0 // pred_check
    _
  $region31: #{seq2seq_forward.3} parent=0 // pred_check_branch
    %1758 = sbr.rel (0) target = $region33
  $region32: #{seq2seq_forward.3} parent=0 // pred_region
    _
  $region33: #{seq2seq_forward.3} parent=0 // pred_fallthru
    _
  // Predicated region
  $region34: #{seq2seq_forward.3} parent=0 // pred_check
    _
  $region35: #{seq2seq_forward.3} parent=0 // pred_check_branch
    %1760 = sbr.rel (0) target = $region37
  $region36: #{seq2seq_forward.3} parent=0 // pred_region
    _
  $region37: #{seq2seq_forward.3} parent=0 // pred_fallthru
    _
  // Predicated region
  $region38: #{seq2seq_forward.3} parent=0 // pred_check
    _
  $region39: #{seq2seq_forward.3} parent=0 // pred_check_branch
    %1762 = sbr.rel (0) target = $region41
  $region40: #{seq2seq_forward.3} parent=0 // pred_region
    _
  $region41: #{seq2seq_forward.3} parent=0 // pred_fallthru
    _

</llo_original>
